<compile_context>
chip_gen: v7x
topology: tpu7x:2x2x1
jax: 0.10.0
libtpu: 0.0.40
codegen_flags: <defaults>
</compile_context>

<pallas_src>
import jax
import jax.numpy as jnp
from jax import lax
from jax.experimental import pallas as pl
from jax.experimental.pallas import tpu as pltpu
import numpy as np

N_AGENTS = 32        # forced by encoded_seq.view(32, 1, 16) in SocialEncoder.sort
INPUT_DIM = 2
MLP_DIM = 16
HIDDEN_DIM = 16

# Scenes processed per grid step.  4 scenes -> 128 lanes: lane-full on every
# generation (one 128-wide pass on v5e, half a 256-wide pass on v6e/v7x).
# TODO(synk): bump to 8 (256 lanes) on v6e/v7x if profiling shows MXU slack.
SCENES_PER_BLOCK = 4
LANES_PER_BLOCK = SCENES_PER_BLOCK * N_AGENTS          # 128

# Packed parameter slab (144, 24) f32 -- one HBM->VMEM DMA, torch-native
# orientation so the feature-major recurrence uses it directly:
#   rows   0: 64, cols  0:16  -> W_ih  (4H, E)   torch lstm.weight_ih_l0
#   rows  64:128, cols  0:16  -> W_hh  (4H, H)   torch lstm.weight_hh_l0
#   rows   0: 64, cols 16:17  -> b_ih + b_hh     folded bias column
#   rows 128:144, cols  0: 2  -> W_mlp (16, 2)   torch linear.weight
#   rows 128:144, cols  2: 3  -> b_mlp column
PACK_ROWS = 8 * HIDDEN_DIM + MLP_DIM                   # 144
PACK_COLS = 24


def social_encoder_kernel(x_ref, w_ref, out_ref):
    """Fused spatial-MLP + single-layer LSTM for one block of scenes.

    Feature-major layout: the lane axis enumerates scene*32 + agent, so matmul
    results, gate activations and the final store are all lane-dense.

    x_ref  : (T, 2, L)  f32  xy coordinates, L = SCENES_PER_BLOCK * 32 lanes
    w_ref  : (144, 24)  f32  packed parameter slab (layout above)
    out_ref: (16, L)    f32  final hidden state h_n (features x lanes)
    """
    T = x_ref.shape[0]
    L = x_ref.shape[2]
    H = HIDDEN_DIM

    # ---- unpack the slab once (static, 8-aligned sublane offsets) -----------
    w_ih = w_ref[0:4 * H, 0:MLP_DIM]                              # (64, 16)
    w_hh = w_ref[4 * H:8 * H, 0:H]                                # (64, 16)
    bias = w_ref[0:4 * H, MLP_DIM:MLP_DIM + 1]                    # (64, 1)
    w_mlp = w_ref[8 * H:8 * H + MLP_DIM, 0:INPUT_DIM]             # (16, 2)
    b_mlp = w_ref[8 * H:8 * H + MLP_DIM, INPUT_DIM:INPUT_DIM + 1]  # (16, 1)

    h = jnp.zeros((H, L), jnp.float32)
    c = jnp.zeros((H, L), jnp.float32)

    # Fully-unrolled recurrence (T is static & small).  The per-step spatial
    # MLP and W_ih projection depend only on x, so the scheduler overlaps them
    # with the previous step's recurrence math; only h @ W_hh is serial and
    # step 0 is not gated on a whole-sequence hoisted projection.
    for t in range(T):
        x_t = x_ref[t]                                            # (2, L)
        # K=2 "matmul" as two VPU outer products (avoids a wasted MXU pass).
        emb = jnp.maximum(
            w_mlp[:, 0:1] * x_t[0:1, :]
            + w_mlp[:, 1:2] * x_t[1:2, :]
            + b_mlp,
            0.0)                                                  # (16, L)
        gates = (jnp.dot(w_ih, emb, preferred_element_type=jnp.float32)
                 + bias
                 + jnp.dot(w_hh, h, preferred_element_type=jnp.float32))  # (64, L)
        # torch gate order along rows: [i, f, g, o]; all EUP pushes lane-full.
        i_g = jax.nn.sigmoid(gates[0 * H:1 * H, :])
        f_g = jax.nn.sigmoid(gates[1 * H:2 * H, :])
        g_g = jnp.tanh(gates[2 * H:3 * H, :])
        o_g = jax.nn.sigmoid(gates[3 * H:4 * H, :])
        c = f_g * c + i_g * g_g
        h = o_g * jnp.tanh(c)

    # Unmasked, lane-dense store of h_n.
    # TODO(synk): if profiling shows XLA does not fuse the wrapper-side
    # broadcast into the consumer, emit the tiled (L, 32*16) output here
    # instead (h^T @ lane-tiled identity) to drop that op from the graph.
    out_ref[...] = h.astype(out_ref.dtype)


def _pack_params(params):
    """Pack the six tiny parameter tensors into one (144, 24) f32 slab."""
    H = HIDDEN_DIM
    slab = jnp.zeros((PACK_ROWS, PACK_COLS), jnp.float32)
    slab = slab.at[0:4 * H, 0:MLP_DIM].set(params["w_ih"].astype(jnp.float32))
    slab = slab.at[4 * H:8 * H, 0:H].set(params["w_hh"].astype(jnp.float32))
    slab = slab.at[0:4 * H, MLP_DIM:MLP_DIM + 1].set(
        (params["b_ih"] + params["b_hh"]).astype(jnp.float32)[:, None])
    slab = slab.at[8 * H:8 * H + MLP_DIM, 0:INPUT_DIM].set(
        params["w_mlp"].astype(jnp.float32))
    slab = slab.at[8 * H:8 * H + MLP_DIM, INPUT_DIM:INPUT_DIM + 1].set(
        params["b_mlp"].astype(jnp.float32)[:, None])
    return slab


def social_encoder_forward_batched(input_seqs, params):
    """Batched forward: input_seqs (B, T, 32, 2) -> (B, 32, 32, 16).

    Independent scenes are packed into the lane dimension and tiled over a 1-D
    "parallel" grid of scene blocks (sharded over the 2 TCs on v7x; enables
    input/output DMA double-buffering on every generation).
    """
    B, T, N, D = input_seqs.shape
    assert N == N_AGENTS and D == INPUT_DIM

    sb = SCENES_PER_BLOCK
    b_pad = -(-B // sb) * sb
    x = input_seqs.astype(jnp.float32)
    if b_pad != B:   # pad with dummy scenes so every block has 128 lanes
        x = jnp.concatenate(
            [x, jnp.zeros((b_pad - B, T, N, D), jnp.float32)], axis=0)

    # Lane-dense layout: x_lay[t, d, b*32 + a] = x[b, t, a, d].
    x_lay = jnp.transpose(x, (1, 3, 0, 2)).reshape(T, D, b_pad * N)
    slab = _pack_params(params)

    lanes = b_pad * N
    h_t = pl.pallas_call(
        social_encoder_kernel,
        out_shape=jax.ShapeDtypeStruct((HIDDEN_DIM, lanes), jnp.float32),
        grid=(b_pad // sb,),
        in_specs=[
            pl.BlockSpec((T, D, LANES_PER_BLOCK), lambda i: (0, 0, i)),
            pl.BlockSpec((PACK_ROWS, PACK_COLS), lambda i: (0, 0)),
        ],
        out_specs=pl.BlockSpec((HIDDEN_DIM, LANES_PER_BLOCK), lambda i: (0, i)),
        compiler_params=pltpu.CompilerParams(
            dimension_semantics=("parallel",)),
    )(x_lay, slab)

    # h_n[b, a, :] = h_t[:, b*32 + a].  SocialEncoder.sort() repeats each
    # agent's encoding 32x and permutes those *identical* copies by
    # argsort(distances[train_len][a]) -- an exact identity -- so the result
    # is a pure broadcast of h_n (left to XLA, where it can fuse downstream).
    h_n = h_t.T.reshape(b_pad, N, HIDDEN_DIM)[:B]
    return jnp.broadcast_to(h_n[:, :, None, :], (B, N, N, HIDDEN_DIM))


def social_encoder_forward(input_seq, distances, params, train_len=8):
    """Exact SocialEncoder.forward semantics for one scene.

    input_seq: (T, 32, 2); distances: (>= train_len + 1, 32, 32).
    Returns the (32, 32, 16) 'sorted' social encoding.
    """
    del distances, train_len    # identity permutation -- see comment above
    return social_encoder_forward_batched(input_seq[None], params)[0]


def init_params(key):
    """Torch-default U(-1/sqrt(fan), 1/sqrt(fan)) init, torch-native layouts."""
    ks = jax.random.split(key, 6)
    lin_b = 1.0 / np.sqrt(INPUT_DIM)
    lstm_b = 1.0 / np.sqrt(HIDDEN_DIM)
    u = lambda k, shape, b: jax.random.uniform(k, shape, jnp.float32, -b, b)
    return {
        "w_mlp": u(ks[0], (MLP_DIM, INPUT_DIM), lin_b),        # Linear.weight (16, 2)
        "b_mlp": u(ks[1], (MLP_DIM,), lin_b),
        "w_ih": u(ks[2], (4 * HIDDEN_DIM, MLP_DIM), lstm_b),   # weight_ih_l0 (64, 16)
        "b_ih": u(ks[3], (4 * HIDDEN_DIM,), lstm_b),
        "w_hh": u(ks[4], (4 * HIDDEN_DIM, HIDDEN_DIM), lstm_b),  # weight_hh_l0
        "b_hh": u(ks[5], (4 * HIDDEN_DIM,), lstm_b),
    }


def reference_forward(input_seq, distances, params, train_len=8):
    """Pure-JAX reference mirroring the PyTorch module op-for-op, including the
    real repeat + argsort permutation inside sort() (so the self-test actually
    checks the identity-permutation claim)."""
    H = HIDDEN_DIM
    w_mlp, b_mlp = params["w_mlp"], params["b_mlp"]
    w_ih, b_ih = params["w_ih"], params["b_ih"]
    w_hh, b_hh = params["w_hh"], params["b_hh"]

    emb = jnp.maximum(
        jnp.einsum("tad,ed->tae", input_seq.astype(jnp.float32), w_mlp) + b_mlp,
        0.0)                                                     # (T, 32, 16)

    def cell(carry, e_t):
        h, c = carry
        gates = e_t @ w_ih.T + b_ih + h @ w_hh.T + b_hh          # (32, 64)
        i_g = jax.nn.sigmoid(gates[:, 0 * H:1 * H])
        f_g = jax.nn.sigmoid(gates[:, 1 * H:2 * H])
        g_g = jnp.tanh(gates[:, 2 * H:3 * H])
        o_g = jax.nn.sigmoid(gates[:, 3 * H:4 * H])
        c_new = f_g * c + i_g * g_g
        h_new = o_g * jnp.tanh(c_new)
        return (h_new, c_new), None

    h0 = jnp.zeros((N_AGENTS, H), jnp.float32)
    c0 = jnp.zeros((N_AGENTS, H), jnp.float32)
    (h_n, _), _ = lax.scan(cell, (h0, c0), emb)

    # sort(): repeat each agent's encoding 32x, then permute those (identical)
    # copies by argsort of that agent's distances.
    sortout = jnp.broadcast_to(h_n[:, None, :], (N_AGENTS, N_AGENTS, H))
    order = jnp.argsort(distances[train_len], axis=-1)           # (32, 32)
    return jnp.take_along_axis(sortout, order[:, :, None], axis=1)


if __name__ == "__main__":
    key = jax.random.PRNGKey(0)
    k_param, k_x, k_d, k_b = jax.random.split(key, 4)

    params = init_params(k_param)

    seq_len, train_len = 8, 8
    input_seq = jax.random.normal(k_x, (seq_len, N_AGENTS, INPUT_DIM), jnp.float32)
    distances = jax.random.uniform(k_d, (train_len + 1, N_AGENTS, N_AGENTS),
                                   jnp.float32)

    # --- single scene: exact module semantics --------------------------------
    fwd = jax.jit(social_encoder_forward, static_argnames=("train_len",))
    out = jax.block_until_ready(fwd(input_seq, distances, params,
                                    train_len=train_len))
    ref = reference_forward(input_seq, distances, params, train_len=train_len)
    np.testing.assert_allclose(np.asarray(out), np.asarray(ref),
                               rtol=1e-5, atol=1e-5)
    assert out.shape == (N_AGENTS, N_AGENTS, HIDDEN_DIM)

    # --- batched scenes: exercises the parallel grid over scene blocks -------
    B = 8
    input_seqs = jax.random.normal(k_b, (B, seq_len, N_AGENTS, INPUT_DIM),
                                   jnp.float32)
    fwd_b = jax.jit(social_encoder_forward_batched)
    out_b = jax.block_until_ready(fwd_b(input_seqs, params))
    ref_b = jnp.stack([
        reference_forward(input_seqs[b], distances, params, train_len=train_len)
        for b in range(B)])
    np.testing.assert_allclose(np.asarray(out_b), np.asarray(ref_b),
                               rtol=1e-5, atol=1e-5)
    assert out_b.shape == (B, N_AGENTS, N_AGENTS, HIDDEN_DIM)

    print("KERNEL_OK")
</pallas_src>

<mosaic_0001>
module attributes {stable_mosaic.version = 11 : i64} {
  func.func @social_encoder_kernel(%arg0: i32, %arg1: memref<8x2x128xf32, #tpu.memory_space<vmem>>, %arg2: memref<144x24xf32, #tpu.memory_space<vmem>>, %arg3: memref<16x128xf32, #tpu.memory_space<vmem>>) attributes {dimension_semantics = [#tpu.dimension_semantics<parallel>], iteration_bounds = array<i64: 1>, scalar_prefetch = 0 : i64, scratch_operands = 0 : i64, tpu.core_type = #tpu.core_type<tc>, window_params = [{transform_indices = @transform_0, window_bounds = array<i64: 8, 2, 128>}, {pipeline_mode = #tpu.pipeline_mode<synchronous>, transform_indices = @transform_1, window_bounds = array<i64: 144, 24>}, {transform_indices = @transform_2, window_bounds = array<i64: 16, 128>}]} {
    %c0 = arith.constant 0 : index
    %c0_0 = arith.constant 0 : index
    %0 = vector.load %arg2[%c0, %c0_0] : memref<144x24xf32, #tpu.memory_space<vmem>>, vector<64x16xf32>
    %c64 = arith.constant 64 : index
    %c0_1 = arith.constant 0 : index
    %1 = vector.load %arg2[%c64, %c0_1] : memref<144x24xf32, #tpu.memory_space<vmem>>, vector<64x16xf32>
    %c0_2 = arith.constant 0 : index
    %c16 = arith.constant 16 : index
    %2 = vector.load %arg2[%c0_2, %c16] : memref<144x24xf32, #tpu.memory_space<vmem>>, vector<64x1xf32>
    %c128 = arith.constant 128 : index
    %c0_3 = arith.constant 0 : index
    %3 = vector.load %arg2[%c128, %c0_3] : memref<144x24xf32, #tpu.memory_space<vmem>>, vector<16x2xf32>
    %c128_4 = arith.constant 128 : index
    %c2 = arith.constant 2 : index
    %4 = vector.load %arg2[%c128_4, %c2] : memref<144x24xf32, #tpu.memory_space<vmem>>, vector<16x1xf32>
    %cst = arith.constant 0.000000e+00 : f32
    %5 = vector.broadcast %cst : f32 to vector<16x128xf32>
    %cst_5 = arith.constant 0.000000e+00 : f32
    %6 = vector.broadcast %cst_5 : f32 to vector<16x128xf32>
    %c0_6 = arith.constant 0 : index
    %c0_7 = arith.constant 0 : index
    %c0_8 = arith.constant 0 : index
    %7 = vector.load %arg1[%c0_6, %c0_7, %c0_8] : memref<8x2x128xf32, #tpu.memory_space<vmem>>, vector<1x2x128xf32>
    %8 = vector.shape_cast %7 : vector<1x2x128xf32> to vector<2x128xf32>
    %9 = vector.extract_strided_slice %3 {offsets = [0, 0], sizes = [16, 1], strides = [1, 1]} : vector<16x2xf32> to vector<16x1xf32>
    %10 = vector.extract_strided_slice %8 {offsets = [0, 0], sizes = [1, 128], strides = [1, 1]} : vector<2x128xf32> to vector<1x128xf32>
    %11 = vector.broadcast %9 : vector<16x1xf32> to vector<16x128xf32>
    %12 = vector.broadcast %10 : vector<1x128xf32> to vector<16x128xf32>
    %13 = arith.mulf %11, %12 : vector<16x128xf32>
    %14 = vector.extract_strided_slice %3 {offsets = [0, 1], sizes = [16, 1], strides = [1, 1]} : vector<16x2xf32> to vector<16x1xf32>
    %15 = vector.extract_strided_slice %8 {offsets = [1, 0], sizes = [1, 128], strides = [1, 1]} : vector<2x128xf32> to vector<1x128xf32>
    %16 = vector.broadcast %14 : vector<16x1xf32> to vector<16x128xf32>
    %17 = vector.broadcast %15 : vector<1x128xf32> to vector<16x128xf32>
    %18 = arith.mulf %16, %17 : vector<16x128xf32>
    %19 = arith.addf %13, %18 : vector<16x128xf32>
    %20 = vector.broadcast %4 : vector<16x1xf32> to vector<16x128xf32>
    %21 = arith.addf %19, %20 : vector<16x128xf32>
    %cst_9 = arith.constant 0.000000e+00 : f32
    %22 = vector.broadcast %cst_9 : f32 to vector<16x128xf32>
    %23 = arith.maximumf %21, %22 : vector<16x128xf32>
    %cst_10 = arith.constant dense<0.000000e+00> : vector<64x128xf32>
    %24 = tpu.matmul %0, %23, %cst_10 {dimension_numbers = #tpu.dot_dimension_numbers<[1], [0], [0], [1], [0, 0, 1, 1], [], []>} : vector<64x16xf32>, vector<16x128xf32>, vector<64x128xf32> -> vector<64x128xf32>
    %25 = vector.broadcast %2 : vector<64x1xf32> to vector<64x128xf32>
    %26 = arith.addf %24, %25 : vector<64x128xf32>
    %cst_11 = arith.constant dense<0.000000e+00> : vector<64x128xf32>
    %27 = tpu.matmul %1, %5, %cst_11 {dimension_numbers = #tpu.dot_dimension_numbers<[1], [0], [0], [1], [0, 0, 1, 1], [], []>} : vector<64x16xf32>, vector<16x128xf32>, vector<64x128xf32> -> vector<64x128xf32>
    %28 = arith.addf %26, %27 : vector<64x128xf32>
    %29 = vector.extract_strided_slice %28 {offsets = [0, 0], sizes = [16, 128], strides = [1, 1]} : vector<64x128xf32> to vector<16x128xf32>
    %30 = arith.negf %29 : vector<16x128xf32>
    %31 = math.exp %30 : vector<16x128xf32>
    %cst_12 = arith.constant 1.000000e+00 : f32
    %32 = vector.broadcast %cst_12 : f32 to vector<16x128xf32>
    %33 = arith.addf %32, %31 : vector<16x128xf32>
    %34 = arith.divf %32, %33 : vector<16x128xf32>
    %35 = vector.extract_strided_slice %28 {offsets = [16, 0], sizes = [16, 128], strides = [1, 1]} : vector<64x128xf32> to vector<16x128xf32>
    %36 = arith.negf %35 : vector<16x128xf32>
    %37 = math.exp %36 : vector<16x128xf32>
    %cst_13 = arith.constant 1.000000e+00 : f32
    %38 = vector.broadcast %cst_13 : f32 to vector<16x128xf32>
    %39 = arith.addf %38, %37 : vector<16x128xf32>
    %40 = arith.divf %38, %39 : vector<16x128xf32>
    %41 = vector.extract_strided_slice %28 {offsets = [32, 0], sizes = [16, 128], strides = [1, 1]} : vector<64x128xf32> to vector<16x128xf32>
    %42 = math.tanh %41 : vector<16x128xf32>
    %43 = vector.extract_strided_slice %28 {offsets = [48, 0], sizes = [16, 128], strides = [1, 1]} : vector<64x128xf32> to vector<16x128xf32>
    %44 = arith.negf %43 : vector<16x128xf32>
    %45 = math.exp %44 : vector<16x128xf32>
    %cst_14 = arith.constant 1.000000e+00 : f32
    %46 = vector.broadcast %cst_14 : f32 to vector<16x128xf32>
    %47 = arith.addf %46, %45 : vector<16x128xf32>
    %48 = arith.divf %46, %47 : vector<16x128xf32>
    %49 = arith.mulf %40, %6 : vector<16x128xf32>
    %50 = arith.mulf %34, %42 : vector<16x128xf32>
    %51 = arith.addf %49, %50 : vector<16x128xf32>
    %52 = math.tanh %51 : vector<16x128xf32>
    %53 = arith.mulf %48, %52 : vector<16x128xf32>
    %c1 = arith.constant 1 : index
    %c0_15 = arith.constant 0 : index
    %c0_16 = arith.constant 0 : index
    %54 = vector.load %arg1[%c1, %c0_15, %c0_16] : memref<8x2x128xf32, #tpu.memory_space<vmem>>, vector<1x2x128xf32>
    %55 = vector.shape_cast %54 : vector<1x2x128xf32> to vector<2x128xf32>
    %56 = vector.extract_strided_slice %3 {offsets = [0, 0], sizes = [16, 1], strides = [1, 1]} : vector<16x2xf32> to vector<16x1xf32>
    %57 = vector.extract_strided_slice %55 {offsets = [0, 0], sizes = [1, 128], strides = [1, 1]} : vector<2x128xf32> to vector<1x128xf32>
    %58 = vector.broadcast %56 : vector<16x1xf32> to vector<16x128xf32>
    %59 = vector.broadcast %57 : vector<1x128xf32> to vector<16x128xf32>
    %60 = arith.mulf %58, %59 : vector<16x128xf32>
    %61 = vector.extract_strided_slice %3 {offsets = [0, 1], sizes = [16, 1], strides = [1, 1]} : vector<16x2xf32> to vector<16x1xf32>
    %62 = vector.extract_strided_slice %55 {offsets = [1, 0], sizes = [1, 128], strides = [1, 1]} : vector<2x128xf32> to vector<1x128xf32>
    %63 = vector.broadcast %61 : vector<16x1xf32> to vector<16x128xf32>
    %64 = vector.broadcast %62 : vector<1x128xf32> to vector<16x128xf32>
    %65 = arith.mulf %63, %64 : vector<16x128xf32>
    %66 = arith.addf %60, %65 : vector<16x128xf32>
    %67 = vector.broadcast %4 : vector<16x1xf32> to vector<16x128xf32>
    %68 = arith.addf %66, %67 : vector<16x128xf32>
    %cst_17 = arith.constant 0.000000e+00 : f32
    %69 = vector.broadcast %cst_17 : f32 to vector<16x128xf32>
    %70 = arith.maximumf %68, %69 : vector<16x128xf32>
    %cst_18 = arith.constant dense<0.000000e+00> : vector<64x128xf32>
    %71 = tpu.matmul %0, %70, %cst_18 {dimension_numbers = #tpu.dot_dimension_numbers<[1], [0], [0], [1], [0, 0, 1, 1], [], []>} : vector<64x16xf32>, vector<16x128xf32>, vector<64x128xf32> -> vector<64x128xf32>
    %72 = vector.broadcast %2 : vector<64x1xf32> to vector<64x128xf32>
    %73 = arith.addf %71, %72 : vector<64x128xf32>
    %cst_19 = arith.constant dense<0.000000e+00> : vector<64x128xf32>
    %74 = tpu.matmul %1, %53, %cst_19 {dimension_numbers = #tpu.dot_dimension_numbers<[1], [0], [0], [1], [0, 0, 1, 1], [], []>} : vector<64x16xf32>, vector<16x128xf32>, vector<64x128xf32> -> vector<64x128xf32>
    %75 = arith.addf %73, %74 : vector<64x128xf32>
    %76 = vector.extract_strided_slice %75 {offsets = [0, 0], sizes = [16, 128], strides = [1, 1]} : vector<64x128xf32> to vector<16x128xf32>
    %77 = arith.negf %76 : vector<16x128xf32>
    %78 = math.exp %77 : vector<16x128xf32>
    %cst_20 = arith.constant 1.000000e+00 : f32
    %79 = vector.broadcast %cst_20 : f32 to vector<16x128xf32>
    %80 = arith.addf %79, %78 : vector<16x128xf32>
    %81 = arith.divf %79, %80 : vector<16x128xf32>
    %82 = vector.extract_strided_slice %75 {offsets = [16, 0], sizes = [16, 128], strides = [1, 1]} : vector<64x128xf32> to vector<16x128xf32>
    %83 = arith.negf %82 : vector<16x128xf32>
    %84 = math.exp %83 : vector<16x128xf32>
    %cst_21 = arith.constant 1.000000e+00 : f32
    %85 = vector.broadcast %cst_21 : f32 to vector<16x128xf32>
    %86 = arith.addf %85, %84 : vector<16x128xf32>
    %87 = arith.divf %85, %86 : vector<16x128xf32>
    %88 = vector.extract_strided_slice %75 {offsets = [32, 0], sizes = [16, 128], strides = [1, 1]} : vector<64x128xf32> to vector<16x128xf32>
    %89 = math.tanh %88 : vector<16x128xf32>
    %90 = vector.extract_strided_slice %75 {offsets = [48, 0], sizes = [16, 128], strides = [1, 1]} : vector<64x128xf32> to vector<16x128xf32>
    %91 = arith.negf %90 : vector<16x128xf32>
    %92 = math.exp %91 : vector<16x128xf32>
    %cst_22 = arith.constant 1.000000e+00 : f32
    %93 = vector.broadcast %cst_22 : f32 to vector<16x128xf32>
    %94 = arith.addf %93, %92 : vector<16x128xf32>
    %95 = arith.divf %93, %94 : vector<16x128xf32>
    %96 = arith.mulf %87, %51 : vector<16x128xf32>
    %97 = arith.mulf %81, %89 : vector<16x128xf32>
    %98 = arith.addf %96, %97 : vector<16x128xf32>
    %99 = math.tanh %98 : vector<16x128xf32>
    %100 = arith.mulf %95, %99 : vector<16x128xf32>
    %c2_23 = arith.constant 2 : index
    %c0_24 = arith.constant 0 : index
    %c0_25 = arith.constant 0 : index
    %101 = vector.load %arg1[%c2_23, %c0_24, %c0_25] : memref<8x2x128xf32, #tpu.memory_space<vmem>>, vector<1x2x128xf32>
    %102 = vector.shape_cast %101 : vector<1x2x128xf32> to vector<2x128xf32>
    %103 = vector.extract_strided_slice %3 {offsets = [0, 0], sizes = [16, 1], strides = [1, 1]} : vector<16x2xf32> to vector<16x1xf32>
    %104 = vector.extract_strided_slice %102 {offsets = [0, 0], sizes = [1, 128], strides = [1, 1]} : vector<2x128xf32> to vector<1x128xf32>
    %105 = vector.broadcast %103 : vector<16x1xf32> to vector<16x128xf32>
    %106 = vector.broadcast %104 : vector<1x128xf32> to vector<16x128xf32>
    %107 = arith.mulf %105, %106 : vector<16x128xf32>
    %108 = vector.extract_strided_slice %3 {offsets = [0, 1], sizes = [16, 1], strides = [1, 1]} : vector<16x2xf32> to vector<16x1xf32>
    %109 = vector.extract_strided_slice %102 {offsets = [1, 0], sizes = [1, 128], strides = [1, 1]} : vector<2x128xf32> to vector<1x128xf32>
    %110 = vector.broadcast %108 : vector<16x1xf32> to vector<16x128xf32>
    %111 = vector.broadcast %109 : vector<1x128xf32> to vector<16x128xf32>
    %112 = arith.mulf %110, %111 : vector<16x128xf32>
    %113 = arith.addf %107, %112 : vector<16x128xf32>
    %114 = vector.broadcast %4 : vector<16x1xf32> to vector<16x128xf32>
    %115 = arith.addf %113, %114 : vector<16x128xf32>
    %cst_26 = arith.constant 0.000000e+00 : f32
    %116 = vector.broadcast %cst_26 : f32 to vector<16x128xf32>
    %117 = arith.maximumf %115, %116 : vector<16x128xf32>
    %cst_27 = arith.constant dense<0.000000e+00> : vector<64x128xf32>
    %118 = tpu.matmul %0, %117, %cst_27 {dimension_numbers = #tpu.dot_dimension_numbers<[1], [0], [0], [1], [0, 0, 1, 1], [], []>} : vector<64x16xf32>, vector<16x128xf32>, vector<64x128xf32> -> vector<64x128xf32>
    %119 = vector.broadcast %2 : vector<64x1xf32> to vector<64x128xf32>
    %120 = arith.addf %118, %119 : vector<64x128xf32>
    %cst_28 = arith.constant dense<0.000000e+00> : vector<64x128xf32>
    %121 = tpu.matmul %1, %100, %cst_28 {dimension_numbers = #tpu.dot_dimension_numbers<[1], [0], [0], [1], [0, 0, 1, 1], [], []>} : vector<64x16xf32>, vector<16x128xf32>, vector<64x128xf32> -> vector<64x128xf32>
    %122 = arith.addf %120, %121 : vector<64x128xf32>
    %123 = vector.extract_strided_slice %122 {offsets = [0, 0], sizes = [16, 128], strides = [1, 1]} : vector<64x128xf32> to vector<16x128xf32>
    %124 = arith.negf %123 : vector<16x128xf32>
    %125 = math.exp %124 : vector<16x128xf32>
    %cst_29 = arith.constant 1.000000e+00 : f32
    %126 = vector.broadcast %cst_29 : f32 to vector<16x128xf32>
    %127 = arith.addf %126, %125 : vector<16x128xf32>
    %128 = arith.divf %126, %127 : vector<16x128xf32>
    %129 = vector.extract_strided_slice %122 {offsets = [16, 0], sizes = [16, 128], strides = [1, 1]} : vector<64x128xf32> to vector<16x128xf32>
    %130 = arith.negf %129 : vector<16x128xf32>
    %131 = math.exp %130 : vector<16x128xf32>
    %cst_30 = arith.constant 1.000000e+00 : f32
    %132 = vector.broadcast %cst_30 : f32 to vector<16x128xf32>
    %133 = arith.addf %132, %131 : vector<16x128xf32>
    %134 = arith.divf %132, %133 : vector<16x128xf32>
    %135 = vector.extract_strided_slice %122 {offsets = [32, 0], sizes = [16, 128], strides = [1, 1]} : vector<64x128xf32> to vector<16x128xf32>
    %136 = math.tanh %135 : vector<16x128xf32>
    %137 = vector.extract_strided_slice %122 {offsets = [48, 0], sizes = [16, 128], strides = [1, 1]} : vector<64x128xf32> to vector<16x128xf32>
    %138 = arith.negf %137 : vector<16x128xf32>
    %139 = math.exp %138 : vector<16x128xf32>
    %cst_31 = arith.constant 1.000000e+00 : f32
    %140 = vector.broadcast %cst_31 : f32 to vector<16x128xf32>
    %141 = arith.addf %140, %139 : vector<16x128xf32>
    %142 = arith.divf %140, %141 : vector<16x128xf32>
    %143 = arith.mulf %134, %98 : vector<16x128xf32>
    %144 = arith.mulf %128, %136 : vector<16x128xf32>
    %145 = arith.addf %143, %144 : vector<16x128xf32>
    %146 = math.tanh %145 : vector<16x128xf32>
    %147 = arith.mulf %142, %146 : vector<16x128xf32>
    %c3 = arith.constant 3 : index
    %c0_32 = arith.constant 0 : index
    %c0_33 = arith.constant 0 : index
    %148 = vector.load %arg1[%c3, %c0_32, %c0_33] : memref<8x2x128xf32, #tpu.memory_space<vmem>>, vector<1x2x128xf32>
    %149 = vector.shape_cast %148 : vector<1x2x128xf32> to vector<2x128xf32>
    %150 = vector.extract_strided_slice %3 {offsets = [0, 0], sizes = [16, 1], strides = [1, 1]} : vector<16x2xf32> to vector<16x1xf32>
    %151 = vector.extract_strided_slice %149 {offsets = [0, 0], sizes = [1, 128], strides = [1, 1]} : vector<2x128xf32> to vector<1x128xf32>
    %152 = vector.broadcast %150 : vector<16x1xf32> to vector<16x128xf32>
    %153 = vector.broadcast %151 : vector<1x128xf32> to vector<16x128xf32>
    %154 = arith.mulf %152, %153 : vector<16x128xf32>
    %155 = vector.extract_strided_slice %3 {offsets = [0, 1], sizes = [16, 1], strides = [1, 1]} : vector<16x2xf32> to vector<16x1xf32>
    %156 = vector.extract_strided_slice %149 {offsets = [1, 0], sizes = [1, 128], strides = [1, 1]} : vector<2x128xf32> to vector<1x128xf32>
    %157 = vector.broadcast %155 : vector<16x1xf32> to vector<16x128xf32>
    %158 = vector.broadcast %156 : vector<1x128xf32> to vector<16x128xf32>
    %159 = arith.mulf %157, %158 : vector<16x128xf32>
    %160 = arith.addf %154, %159 : vector<16x128xf32>
    %161 = vector.broadcast %4 : vector<16x1xf32> to vector<16x128xf32>
    %162 = arith.addf %160, %161 : vector<16x128xf32>
    %cst_34 = arith.constant 0.000000e+00 : f32
    %163 = vector.broadcast %cst_34 : f32 to vector<16x128xf32>
    %164 = arith.maximumf %162, %163 : vector<16x128xf32>
    %cst_35 = arith.constant dense<0.000000e+00> : vector<64x128xf32>
    %165 = tpu.matmul %0, %164, %cst_35 {dimension_numbers = #tpu.dot_dimension_numbers<[1], [0], [0], [1], [0, 0, 1, 1], [], []>} : vector<64x16xf32>, vector<16x128xf32>, vector<64x128xf32> -> vector<64x128xf32>
    %166 = vector.broadcast %2 : vector<64x1xf32> to vector<64x128xf32>
    %167 = arith.addf %165, %166 : vector<64x128xf32>
    %cst_36 = arith.constant dense<0.000000e+00> : vector<64x128xf32>
    %168 = tpu.matmul %1, %147, %cst_36 {dimension_numbers = #tpu.dot_dimension_numbers<[1], [0], [0], [1], [0, 0, 1, 1], [], []>} : vector<64x16xf32>, vector<16x128xf32>, vector<64x128xf32> -> vector<64x128xf32>
    %169 = arith.addf %167, %168 : vector<64x128xf32>
    %170 = vector.extract_strided_slice %169 {offsets = [0, 0], sizes = [16, 128], strides = [1, 1]} : vector<64x128xf32> to vector<16x128xf32>
    %171 = arith.negf %170 : vector<16x128xf32>
    %172 = math.exp %171 : vector<16x128xf32>
    %cst_37 = arith.constant 1.000000e+00 : f32
    %173 = vector.broadcast %cst_37 : f32 to vector<16x128xf32>
    %174 = arith.addf %173, %172 : vector<16x128xf32>
    %175 = arith.divf %173, %174 : vector<16x128xf32>
    %176 = vector.extract_strided_slice %169 {offsets = [16, 0], sizes = [16, 128], strides = [1, 1]} : vector<64x128xf32> to vector<16x128xf32>
    %177 = arith.negf %176 : vector<16x128xf32>
    %178 = math.exp %177 : vector<16x128xf32>
    %cst_38 = arith.constant 1.000000e+00 : f32
    %179 = vector.broadcast %cst_38 : f32 to vector<16x128xf32>
    %180 = arith.addf %179, %178 : vector<16x128xf32>
    %181 = arith.divf %179, %180 : vector<16x128xf32>
    %182 = vector.extract_strided_slice %169 {offsets = [32, 0], sizes = [16, 128], strides = [1, 1]} : vector<64x128xf32> to vector<16x128xf32>
    %183 = math.tanh %182 : vector<16x128xf32>
    %184 = vector.extract_strided_slice %169 {offsets = [48, 0], sizes = [16, 128], strides = [1, 1]} : vector<64x128xf32> to vector<16x128xf32>
    %185 = arith.negf %184 : vector<16x128xf32>
    %186 = math.exp %185 : vector<16x128xf32>
    %cst_39 = arith.constant 1.000000e+00 : f32
    %187 = vector.broadcast %cst_39 : f32 to vector<16x128xf32>
    %188 = arith.addf %187, %186 : vector<16x128xf32>
    %189 = arith.divf %187, %188 : vector<16x128xf32>
    %190 = arith.mulf %181, %145 : vector<16x128xf32>
    %191 = arith.mulf %175, %183 : vector<16x128xf32>
    %192 = arith.addf %190, %191 : vector<16x128xf32>
    %193 = math.tanh %192 : vector<16x128xf32>
    %194 = arith.mulf %189, %193 : vector<16x128xf32>
    %c4 = arith.constant 4 : index
    %c0_40 = arith.constant 0 : index
    %c0_41 = arith.constant 0 : index
    %195 = vector.load %arg1[%c4, %c0_40, %c0_41] : memref<8x2x128xf32, #tpu.memory_space<vmem>>, vector<1x2x128xf32>
    %196 = vector.shape_cast %195 : vector<1x2x128xf32> to vector<2x128xf32>
    %197 = vector.extract_strided_slice %3 {offsets = [0, 0], sizes = [16, 1], strides = [1, 1]} : vector<16x2xf32> to vector<16x1xf32>
    %198 = vector.extract_strided_slice %196 {offsets = [0, 0], sizes = [1, 128], strides = [1, 1]} : vector<2x128xf32> to vector<1x128xf32>
    %199 = vector.broadcast %197 : vector<16x1xf32> to vector<16x128xf32>
    %200 = vector.broadcast %198 : vector<1x128xf32> to vector<16x128xf32>
    %201 = arith.mulf %199, %200 : vector<16x128xf32>
    %202 = vector.extract_strided_slice %3 {offsets = [0, 1], sizes = [16, 1], strides = [1, 1]} : vector<16x2xf32> to vector<16x1xf32>
    %203 = vector.extract_strided_slice %196 {offsets = [1, 0], sizes = [1, 128], strides = [1, 1]} : vector<2x128xf32> to vector<1x128xf32>
    %204 = vector.broadcast %202 : vector<16x1xf32> to vector<16x128xf32>
    %205 = vector.broadcast %203 : vector<1x128xf32> to vector<16x128xf32>
    %206 = arith.mulf %204, %205 : vector<16x128xf32>
    %207 = arith.addf %201, %206 : vector<16x128xf32>
    %208 = vector.broadcast %4 : vector<16x1xf32> to vector<16x128xf32>
    %209 = arith.addf %207, %208 : vector<16x128xf32>
    %cst_42 = arith.constant 0.000000e+00 : f32
    %210 = vector.broadcast %cst_42 : f32 to vector<16x128xf32>
    %211 = arith.maximumf %209, %210 : vector<16x128xf32>
    %cst_43 = arith.constant dense<0.000000e+00> : vector<64x128xf32>
    %212 = tpu.matmul %0, %211, %cst_43 {dimension_numbers = #tpu.dot_dimension_numbers<[1], [0], [0], [1], [0, 0, 1, 1], [], []>} : vector<64x16xf32>, vector<16x128xf32>, vector<64x128xf32> -> vector<64x128xf32>
    %213 = vector.broadcast %2 : vector<64x1xf32> to vector<64x128xf32>
    %214 = arith.addf %212, %213 : vector<64x128xf32>
    %cst_44 = arith.constant dense<0.000000e+00> : vector<64x128xf32>
    %215 = tpu.matmul %1, %194, %cst_44 {dimension_numbers = #tpu.dot_dimension_numbers<[1], [0], [0], [1], [0, 0, 1, 1], [], []>} : vector<64x16xf32>, vector<16x128xf32>, vector<64x128xf32> -> vector<64x128xf32>
    %216 = arith.addf %214, %215 : vector<64x128xf32>
    %217 = vector.extract_strided_slice %216 {offsets = [0, 0], sizes = [16, 128], strides = [1, 1]} : vector<64x128xf32> to vector<16x128xf32>
    %218 = arith.negf %217 : vector<16x128xf32>
    %219 = math.exp %218 : vector<16x128xf32>
    %cst_45 = arith.constant 1.000000e+00 : f32
    %220 = vector.broadcast %cst_45 : f32 to vector<16x128xf32>
    %221 = arith.addf %220, %219 : vector<16x128xf32>
    %222 = arith.divf %220, %221 : vector<16x128xf32>
    %223 = vector.extract_strided_slice %216 {offsets = [16, 0], sizes = [16, 128], strides = [1, 1]} : vector<64x128xf32> to vector<16x128xf32>
    %224 = arith.negf %223 : vector<16x128xf32>
    %225 = math.exp %224 : vector<16x128xf32>
    %cst_46 = arith.constant 1.000000e+00 : f32
    %226 = vector.broadcast %cst_46 : f32 to vector<16x128xf32>
    %227 = arith.addf %226, %225 : vector<16x128xf32>
    %228 = arith.divf %226, %227 : vector<16x128xf32>
    %229 = vector.extract_strided_slice %216 {offsets = [32, 0], sizes = [16, 128], strides = [1, 1]} : vector<64x128xf32> to vector<16x128xf32>
    %230 = math.tanh %229 : vector<16x128xf32>
    %231 = vector.extract_strided_slice %216 {offsets = [48, 0], sizes = [16, 128], strides = [1, 1]} : vector<64x128xf32> to vector<16x128xf32>
    %232 = arith.negf %231 : vector<16x128xf32>
    %233 = math.exp %232 : vector<16x128xf32>
    %cst_47 = arith.constant 1.000000e+00 : f32
    %234 = vector.broadcast %cst_47 : f32 to vector<16x128xf32>
    %235 = arith.addf %234, %233 : vector<16x128xf32>
    %236 = arith.divf %234, %235 : vector<16x128xf32>
    %237 = arith.mulf %228, %192 : vector<16x128xf32>
    %238 = arith.mulf %222, %230 : vector<16x128xf32>
    %239 = arith.addf %237, %238 : vector<16x128xf32>
    %240 = math.tanh %239 : vector<16x128xf32>
    %241 = arith.mulf %236, %240 : vector<16x128xf32>
    %c5 = arith.constant 5 : index
    %c0_48 = arith.constant 0 : index
    %c0_49 = arith.constant 0 : index
    %242 = vector.load %arg1[%c5, %c0_48, %c0_49] : memref<8x2x128xf32, #tpu.memory_space<vmem>>, vector<1x2x128xf32>
    %243 = vector.shape_cast %242 : vector<1x2x128xf32> to vector<2x128xf32>
    %244 = vector.extract_strided_slice %3 {offsets = [0, 0], sizes = [16, 1], strides = [1, 1]} : vector<16x2xf32> to vector<16x1xf32>
    %245 = vector.extract_strided_slice %243 {offsets = [0, 0], sizes = [1, 128], strides = [1, 1]} : vector<2x128xf32> to vector<1x128xf32>
    %246 = vector.broadcast %244 : vector<16x1xf32> to vector<16x128xf32>
    %247 = vector.broadcast %245 : vector<1x128xf32> to vector<16x128xf32>
    %248 = arith.mulf %246, %247 : vector<16x128xf32>
    %249 = vector.extract_strided_slice %3 {offsets = [0, 1], sizes = [16, 1], strides = [1, 1]} : vector<16x2xf32> to vector<16x1xf32>
    %250 = vector.extract_strided_slice %243 {offsets = [1, 0], sizes = [1, 128], strides = [1, 1]} : vector<2x128xf32> to vector<1x128xf32>
    %251 = vector.broadcast %249 : vector<16x1xf32> to vector<16x128xf32>
    %252 = vector.broadcast %250 : vector<1x128xf32> to vector<16x128xf32>
    %253 = arith.mulf %251, %252 : vector<16x128xf32>
    %254 = arith.addf %248, %253 : vector<16x128xf32>
    %255 = vector.broadcast %4 : vector<16x1xf32> to vector<16x128xf32>
    %256 = arith.addf %254, %255 : vector<16x128xf32>
    %cst_50 = arith.constant 0.000000e+00 : f32
    %257 = vector.broadcast %cst_50 : f32 to vector<16x128xf32>
    %258 = arith.maximumf %256, %257 : vector<16x128xf32>
    %cst_51 = arith.constant dense<0.000000e+00> : vector<64x128xf32>
    %259 = tpu.matmul %0, %258, %cst_51 {dimension_numbers = #tpu.dot_dimension_numbers<[1], [0], [0], [1], [0, 0, 1, 1], [], []>} : vector<64x16xf32>, vector<16x128xf32>, vector<64x128xf32> -> vector<64x128xf32>
    %260 = vector.broadcast %2 : vector<64x1xf32> to vector<64x128xf32>
    %261 = arith.addf %259, %260 : vector<64x128xf32>
    %cst_52 = arith.constant dense<0.000000e+00> : vector<64x128xf32>
    %262 = tpu.matmul %1, %241, %cst_52 {dimension_numbers = #tpu.dot_dimension_numbers<[1], [0], [0], [1], [0, 0, 1, 1], [], []>} : vector<64x16xf32>, vector<16x128xf32>, vector<64x128xf32> -> vector<64x128xf32>
    %263 = arith.addf %261, %262 : vector<64x128xf32>
    %264 = vector.extract_strided_slice %263 {offsets = [0, 0], sizes = [16, 128], strides = [1, 1]} : vector<64x128xf32> to vector<16x128xf32>
    %265 = arith.negf %264 : vector<16x128xf32>
    %266 = math.exp %265 : vector<16x128xf32>
    %cst_53 = arith.constant 1.000000e+00 : f32
    %267 = vector.broadcast %cst_53 : f32 to vector<16x128xf32>
    %268 = arith.addf %267, %266 : vector<16x128xf32>
    %269 = arith.divf %267, %268 : vector<16x128xf32>
    %270 = vector.extract_strided_slice %263 {offsets = [16, 0], sizes = [16, 128], strides = [1, 1]} : vector<64x128xf32> to vector<16x128xf32>
    %271 = arith.negf %270 : vector<16x128xf32>
    %272 = math.exp %271 : vector<16x128xf32>
    %cst_54 = arith.constant 1.000000e+00 : f32
    %273 = vector.broadcast %cst_54 : f32 to vector<16x128xf32>
    %274 = arith.addf %273, %272 : vector<16x128xf32>
    %275 = arith.divf %273, %274 : vector<16x128xf32>
    %276 = vector.extract_strided_slice %263 {offsets = [32, 0], sizes = [16, 128], strides = [1, 1]} : vector<64x128xf32> to vector<16x128xf32>
    %277 = math.tanh %276 : vector<16x128xf32>
    %278 = vector.extract_strided_slice %263 {offsets = [48, 0], sizes = [16, 128], strides = [1, 1]} : vector<64x128xf32> to vector<16x128xf32>
    %279 = arith.negf %278 : vector<16x128xf32>
    %280 = math.exp %279 : vector<16x128xf32>
    %cst_55 = arith.constant 1.000000e+00 : f32
    %281 = vector.broadcast %cst_55 : f32 to vector<16x128xf32>
    %282 = arith.addf %281, %280 : vector<16x128xf32>
    %283 = arith.divf %281, %282 : vector<16x128xf32>
    %284 = arith.mulf %275, %239 : vector<16x128xf32>
    %285 = arith.mulf %269, %277 : vector<16x128xf32>
    %286 = arith.addf %284, %285 : vector<16x128xf32>
    %287 = math.tanh %286 : vector<16x128xf32>
    %288 = arith.mulf %283, %287 : vector<16x128xf32>
    %c6 = arith.constant 6 : index
    %c0_56 = arith.constant 0 : index
    %c0_57 = arith.constant 0 : index
    %289 = vector.load %arg1[%c6, %c0_56, %c0_57] : memref<8x2x128xf32, #tpu.memory_space<vmem>>, vector<1x2x128xf32>
    %290 = vector.shape_cast %289 : vector<1x2x128xf32> to vector<2x128xf32>
    %291 = vector.extract_strided_slice %3 {offsets = [0, 0], sizes = [16, 1], strides = [1, 1]} : vector<16x2xf32> to vector<16x1xf32>
    %292 = vector.extract_strided_slice %290 {offsets = [0, 0], sizes = [1, 128], strides = [1, 1]} : vector<2x128xf32> to vector<1x128xf32>
    %293 = vector.broadcast %291 : vector<16x1xf32> to vector<16x128xf32>
    %294 = vector.broadcast %292 : vector<1x128xf32> to vector<16x128xf32>
    %295 = arith.mulf %293, %294 : vector<16x128xf32>
    %296 = vector.extract_strided_slice %3 {offsets = [0, 1], sizes = [16, 1], strides = [1, 1]} : vector<16x2xf32> to vector<16x1xf32>
    %297 = vector.extract_strided_slice %290 {offsets = [1, 0], sizes = [1, 128], strides = [1, 1]} : vector<2x128xf32> to vector<1x128xf32>
    %298 = vector.broadcast %296 : vector<16x1xf32> to vector<16x128xf32>
    %299 = vector.broadcast %297 : vector<1x128xf32> to vector<16x128xf32>
    %300 = arith.mulf %298, %299 : vector<16x128xf32>
    %301 = arith.addf %295, %300 : vector<16x128xf32>
    %302 = vector.broadcast %4 : vector<16x1xf32> to vector<16x128xf32>
    %303 = arith.addf %301, %302 : vector<16x128xf32>
    %cst_58 = arith.constant 0.000000e+00 : f32
    %304 = vector.broadcast %cst_58 : f32 to vector<16x128xf32>
    %305 = arith.maximumf %303, %304 : vector<16x128xf32>
    %cst_59 = arith.constant dense<0.000000e+00> : vector<64x128xf32>
    %306 = tpu.matmul %0, %305, %cst_59 {dimension_numbers = #tpu.dot_dimension_numbers<[1], [0], [0], [1], [0, 0, 1, 1], [], []>} : vector<64x16xf32>, vector<16x128xf32>, vector<64x128xf32> -> vector<64x128xf32>
    %307 = vector.broadcast %2 : vector<64x1xf32> to vector<64x128xf32>
    %308 = arith.addf %306, %307 : vector<64x128xf32>
    %cst_60 = arith.constant dense<0.000000e+00> : vector<64x128xf32>
    %309 = tpu.matmul %1, %288, %cst_60 {dimension_numbers = #tpu.dot_dimension_numbers<[1], [0], [0], [1], [0, 0, 1, 1], [], []>} : vector<64x16xf32>, vector<16x128xf32>, vector<64x128xf32> -> vector<64x128xf32>
    %310 = arith.addf %308, %309 : vector<64x128xf32>
    %311 = vector.extract_strided_slice %310 {offsets = [0, 0], sizes = [16, 128], strides = [1, 1]} : vector<64x128xf32> to vector<16x128xf32>
    %312 = arith.negf %311 : vector<16x128xf32>
    %313 = math.exp %312 : vector<16x128xf32>
    %cst_61 = arith.constant 1.000000e+00 : f32
    %314 = vector.broadcast %cst_61 : f32 to vector<16x128xf32>
    %315 = arith.addf %314, %313 : vector<16x128xf32>
    %316 = arith.divf %314, %315 : vector<16x128xf32>
    %317 = vector.extract_strided_slice %310 {offsets = [16, 0], sizes = [16, 128], strides = [1, 1]} : vector<64x128xf32> to vector<16x128xf32>
    %318 = arith.negf %317 : vector<16x128xf32>
    %319 = math.exp %318 : vector<16x128xf32>
    %cst_62 = arith.constant 1.000000e+00 : f32
    %320 = vector.broadcast %cst_62 : f32 to vector<16x128xf32>
    %321 = arith.addf %320, %319 : vector<16x128xf32>
    %322 = arith.divf %320, %321 : vector<16x128xf32>
    %323 = vector.extract_strided_slice %310 {offsets = [32, 0], sizes = [16, 128], strides = [1, 1]} : vector<64x128xf32> to vector<16x128xf32>
    %324 = math.tanh %323 : vector<16x128xf32>
    %325 = vector.extract_strided_slice %310 {offsets = [48, 0], sizes = [16, 128], strides = [1, 1]} : vector<64x128xf32> to vector<16x128xf32>
    %326 = arith.negf %325 : vector<16x128xf32>
    %327 = math.exp %326 : vector<16x128xf32>
    %cst_63 = arith.constant 1.000000e+00 : f32
    %328 = vector.broadcast %cst_63 : f32 to vector<16x128xf32>
    %329 = arith.addf %328, %327 : vector<16x128xf32>
    %330 = arith.divf %328, %329 : vector<16x128xf32>
    %331 = arith.mulf %322, %286 : vector<16x128xf32>
    %332 = arith.mulf %316, %324 : vector<16x128xf32>
    %333 = arith.addf %331, %332 : vector<16x128xf32>
    %334 = math.tanh %333 : vector<16x128xf32>
    %335 = arith.mulf %330, %334 : vector<16x128xf32>
    %c7 = arith.constant 7 : index
    %c0_64 = arith.constant 0 : index
    %c0_65 = arith.constant 0 : index
    %336 = vector.load %arg1[%c7, %c0_64, %c0_65] : memref<8x2x128xf32, #tpu.memory_space<vmem>>, vector<1x2x128xf32>
    %337 = vector.shape_cast %336 : vector<1x2x128xf32> to vector<2x128xf32>
    %338 = vector.extract_strided_slice %3 {offsets = [0, 0], sizes = [16, 1], strides = [1, 1]} : vector<16x2xf32> to vector<16x1xf32>
    %339 = vector.extract_strided_slice %337 {offsets = [0, 0], sizes = [1, 128], strides = [1, 1]} : vector<2x128xf32> to vector<1x128xf32>
    %340 = vector.broadcast %338 : vector<16x1xf32> to vector<16x128xf32>
    %341 = vector.broadcast %339 : vector<1x128xf32> to vector<16x128xf32>
    %342 = arith.mulf %340, %341 : vector<16x128xf32>
    %343 = vector.extract_strided_slice %3 {offsets = [0, 1], sizes = [16, 1], strides = [1, 1]} : vector<16x2xf32> to vector<16x1xf32>
    %344 = vector.extract_strided_slice %337 {offsets = [1, 0], sizes = [1, 128], strides = [1, 1]} : vector<2x128xf32> to vector<1x128xf32>
    %345 = vector.broadcast %343 : vector<16x1xf32> to vector<16x128xf32>
    %346 = vector.broadcast %344 : vector<1x128xf32> to vector<16x128xf32>
    %347 = arith.mulf %345, %346 : vector<16x128xf32>
    %348 = arith.addf %342, %347 : vector<16x128xf32>
    %349 = vector.broadcast %4 : vector<16x1xf32> to vector<16x128xf32>
    %350 = arith.addf %348, %349 : vector<16x128xf32>
    %cst_66 = arith.constant 0.000000e+00 : f32
    %351 = vector.broadcast %cst_66 : f32 to vector<16x128xf32>
    %352 = arith.maximumf %350, %351 : vector<16x128xf32>
    %cst_67 = arith.constant dense<0.000000e+00> : vector<64x128xf32>
    %353 = tpu.matmul %0, %352, %cst_67 {dimension_numbers = #tpu.dot_dimension_numbers<[1], [0], [0], [1], [0, 0, 1, 1], [], []>} : vector<64x16xf32>, vector<16x128xf32>, vector<64x128xf32> -> vector<64x128xf32>
    %354 = vector.broadcast %2 : vector<64x1xf32> to vector<64x128xf32>
    %355 = arith.addf %353, %354 : vector<64x128xf32>
    %cst_68 = arith.constant dense<0.000000e+00> : vector<64x128xf32>
    %356 = tpu.matmul %1, %335, %cst_68 {dimension_numbers = #tpu.dot_dimension_numbers<[1], [0], [0], [1], [0, 0, 1, 1], [], []>} : vector<64x16xf32>, vector<16x128xf32>, vector<64x128xf32> -> vector<64x128xf32>
    %357 = arith.addf %355, %356 : vector<64x128xf32>
    %358 = vector.extract_strided_slice %357 {offsets = [0, 0], sizes = [16, 128], strides = [1, 1]} : vector<64x128xf32> to vector<16x128xf32>
    %359 = arith.negf %358 : vector<16x128xf32>
    %360 = math.exp %359 : vector<16x128xf32>
    %cst_69 = arith.constant 1.000000e+00 : f32
    %361 = vector.broadcast %cst_69 : f32 to vector<16x128xf32>
    %362 = arith.addf %361, %360 : vector<16x128xf32>
    %363 = arith.divf %361, %362 : vector<16x128xf32>
    %364 = vector.extract_strided_slice %357 {offsets = [16, 0], sizes = [16, 128], strides = [1, 1]} : vector<64x128xf32> to vector<16x128xf32>
    %365 = arith.negf %364 : vector<16x128xf32>
    %366 = math.exp %365 : vector<16x128xf32>
    %cst_70 = arith.constant 1.000000e+00 : f32
    %367 = vector.broadcast %cst_70 : f32 to vector<16x128xf32>
    %368 = arith.addf %367, %366 : vector<16x128xf32>
    %369 = arith.divf %367, %368 : vector<16x128xf32>
    %370 = vector.extract_strided_slice %357 {offsets = [32, 0], sizes = [16, 128], strides = [1, 1]} : vector<64x128xf32> to vector<16x128xf32>
    %371 = math.tanh %370 : vector<16x128xf32>
    %372 = vector.extract_strided_slice %357 {offsets = [48, 0], sizes = [16, 128], strides = [1, 1]} : vector<64x128xf32> to vector<16x128xf32>
    %373 = arith.negf %372 : vector<16x128xf32>
    %374 = math.exp %373 : vector<16x128xf32>
    %cst_71 = arith.constant 1.000000e+00 : f32
    %375 = vector.broadcast %cst_71 : f32 to vector<16x128xf32>
    %376 = arith.addf %375, %374 : vector<16x128xf32>
    %377 = arith.divf %375, %376 : vector<16x128xf32>
    %378 = arith.mulf %369, %333 : vector<16x128xf32>
    %379 = arith.mulf %363, %371 : vector<16x128xf32>
    %380 = arith.addf %378, %379 : vector<16x128xf32>
    %381 = math.tanh %380 : vector<16x128xf32>
    %382 = arith.mulf %377, %381 : vector<16x128xf32>
    %c0_72 = arith.constant 0 : index
    %c0_73 = arith.constant 0 : index
    %383 = vector.load %arg3[%c0_72, %c0_73] : memref<16x128xf32, #tpu.memory_space<vmem>>, vector<16x128xf32>
    tpu.vector_store %arg3[%c0_72, %c0_73], %382 {strides = array<i32>} : memref<16x128xf32, #tpu.memory_space<vmem>>, vector<16x128xf32>,
    return
  }
  func.func @transform_0(%arg0: i32) -> (i32, i32, i32) {
    %c0_i32 = arith.constant 0 : i32
    %c0_i32_0 = arith.constant 0 : i32
    %c0_i32_1 = arith.constant 0 : i32
    return %c0_i32, %c0_i32_0, %arg0 : i32, i32, i32
  }
  func.func @transform_1(%arg0: i32) -> (i32, i32) {
    %c0_i32 = arith.constant 0 : i32
    %c0_i32_0 = arith.constant 0 : i32
    %c0_i32_1 = arith.constant 0 : i32
    return %c0_i32, %c0_i32_0 : i32, i32
  }
  func.func @transform_2(%arg0: i32) -> (i32, i32) {
    %c0_i32 = arith.constant 0 : i32
    %c0_i32_0 = arith.constant 0 : i32
    return %c0_i32, %arg0 : i32, i32
  }
}

</mosaic_0001>

<llo_original>
// kernel: social_encoder_forward.1
$region0: #{social_encoder_forward.1}
  #allocation0 [shape = 'u32[]', space=smem, size = 0x4, offset = 0x4, fixed_abs, tag = 'smem constant byte address 0x4 - core index']
  #allocation1 [shape = 'u32[144,128]{1,0:T(1,128)}', space=vmem, size = 0x12000, scoped, tag = 'internal scratch']
  %s0 = inlined_call_operand.vmem [shape: f32[8,2,128], index: 0, kind: input, shape index: {}]
  %s1 = inlined_call_operand.vmem [shape: f32[144,24], index: 1, kind: input, shape index: {}]
  %s2 = inlined_call_operand.vmem [shape: f32[16,128], index: 2, kind: output, shape index: {}]
  %s3 = sld [smem:[#allocation0]]
  $region18: #{social_encoder_forward.1} parent=0
    _
  %s5 = ssub.s32 1, %s3
  %s6 = scalar_select 0, %s5, %s3
  // Predicated region
  $region2: #{social_encoder_forward.1} parent=0 // pred_check
    _
  $region3: #{social_encoder_forward.1} parent=0 // pred_check_branch
    %8 = sbr.rel (0) target = $region5
  $region4: #{social_encoder_forward.1} parent=0 // pred_region
    _
  $region5: #{social_encoder_forward.1} parent=0 // pred_fallthru
    _
  // Predicated region
  $region6: #{social_encoder_forward.1} parent=0 // pred_check
    _
  $region7: #{social_encoder_forward.1} parent=0 // pred_check_branch
    %10 = sbr.rel (0) target = $region9
  $region8: #{social_encoder_forward.1} parent=0 // pred_region
    _
  $region9: #{social_encoder_forward.1} parent=0 // pred_fallthru
    _
  %v11 = vld [vmem:[%s1] sm:$0xff]
  %v12 = vld [vmem:[%s1 + $0x8] sm:$0xff]
  %v13 = vld [vmem:[%s1 + $0x10] sm:$0xff]
  %v14 = vld [vmem:[%s1 + $0x18] sm:$0xff]
  %v15 = vld [vmem:[%s1 + $0x20] sm:$0xff]
  %v16 = vld [vmem:[%s1 + $0x28] sm:$0xff]
  %v17 = vld [vmem:[%s1 + $0x30] sm:$0xff]
  %v18 = vld [vmem:[%s1 + $0x38] sm:$0xff]
  %v19 = vld [vmem:[%s1 + $0x40] sm:$0xff]
  %v20 = vld [vmem:[%s1 + $0x48] sm:$0xff]
  %v21 = vld [vmem:[%s1 + $0x50] sm:$0xff]
  %v22 = vld [vmem:[%s1 + $0x58] sm:$0xff]
  %v23 = vld [vmem:[%s1 + $0x60] sm:$0xff]
  %v24 = vld [vmem:[%s1 + $0x68] sm:$0xff]
  %v25 = vld [vmem:[%s1 + $0x70] sm:$0xff]
  %v26 = vld [vmem:[%s1 + $0x78] sm:$0xff]
  %v27 = vld [vmem:[%s1 + $0x80] sm:$0xff]
  %v28 = vld [vmem:[%s1 + $0x88] sm:$0xff]
  %v29 = vld [vmem:[%s0] sm:$0x3]
  %31 = vset.pattern.permute.xlu0 0
  %32 = vperm.xlu0 %31, %v27
  %v33 = vpop.permute.xlu0 %32
  %36 = vset.pattern.permute.xlu0 0
  %37 = vperm.xlu0 %36, %v28
  %v38 = vpop.permute.xlu0 %37
  %v40 = vlaneseq
  %v41 = vshrl.u32 %v40, 7
  %v42 = vsub.s32 0, %v41
  %v43 = vrot.slane %v29, %v42
  %v44 = vmul.f32 %v33, %v43
  %v45 = vmul.f32 %v38, %v43
  %46 = vset.pattern.permute.xlu0 1
  %47 = vperm.xlu0 %46, %v27
  %v48 = vpop.permute.xlu0 %47
  %50 = vset.pattern.permute.xlu0 1
  %51 = vperm.xlu0 %50, %v28
  %v52 = vpop.permute.xlu0 %51
  %v54 = vlaneseq
  %v55 = vshrl.u32 %v54, 7
  %v56 = vsub.s32 1, %v55
  %v57 = vrot.slane %v29, %v56
  %v58 = vmul.f32 %v48, %v57
  %v59 = vmul.f32 %v52, %v57
  %v60 = vadd.f32 %v44, %v58
  %v61 = vadd.f32 %v45, %v59
  %62 = vset.pattern.permute.xlu0 2
  %63 = vperm.xlu0 %62, %v27
  %v64 = vpop.permute.xlu0 %63
  %66 = vset.pattern.permute.xlu0 2
  %67 = vperm.xlu0 %66, %v28
  %v68 = vpop.permute.xlu0 %67
  %v70 = vadd.f32 %v60, %v64
  %v71 = vadd.f32 %v61, %v68
  %v72 = vmax.f32 %v70, 0.0
  %v73 = vmax.f32 %v71, 0.0
  %75 = vset.pattern.permute.xlu0 16
  %76 = vperm.xlu0 %75, %v11
  %v77 = vpop.permute.xlu0 %76
  %80 = vset.pattern.permute.xlu0 16
  %81 = vperm.xlu0 %80, %v12
  %v82 = vpop.permute.xlu0 %81
  %85 = vset.pattern.permute.xlu0 16
  %86 = vperm.xlu0 %85, %v13
  %v87 = vpop.permute.xlu0 %86
  %90 = vset.pattern.permute.xlu0 16
  %91 = vperm.xlu0 %90, %v14
  %v92 = vpop.permute.xlu0 %91
  %95 = vset.pattern.permute.xlu0 16
  %96 = vperm.xlu0 %95, %v15
  %v97 = vpop.permute.xlu0 %96
  %100 = vset.pattern.permute.xlu0 16
  %101 = vperm.xlu0 %100, %v16
  %v102 = vpop.permute.xlu0 %101
  %105 = vset.pattern.permute.xlu0 16
  %106 = vperm.xlu0 %105, %v17
  %v107 = vpop.permute.xlu0 %106
  %110 = vset.pattern.permute.xlu0 16
  %111 = vperm.xlu0 %110, %v18
  %v112 = vpop.permute.xlu0 %111
  %vm114 = vcmask 130048
  %v115 = vsel %vm114, %v11, 0
  %v117 = vsel %vm114, %v12, 0
  %v119 = vsel %vm114, %v13, 0
  %v121 = vsel %vm114, %v14, 0
  %v123 = vsel %vm114, %v15, 0
  %v125 = vsel %vm114, %v16, 0
  %v127 = vsel %vm114, %v17, 0
  %v129 = vsel %vm114, %v18, 0
  %131 = vmatprep.subr.mxu0 0.0
  %132 = vmatpush1.msra.mxu0 %v72
  %133 = vmatprep.subr.mxu0 0.0
  %134 = vmatpush1.msra.mxu0 %v73
  %135 = vmatprep.subr.mxu0 0.0
  %136 = vmatpush1.msra.mxu0 0.0
  %137 = vmatprep.subr.mxu0 0.0
  %138 = vmatpush1.msra.mxu0 0.0
  %139 = vmatprep.subr.mxu0 0.0
  %140 = vmatpush1.msra.mxu0 0.0
  %141 = vmatprep.subr.mxu0 0.0
  %142 = vmatpush1.msra.mxu0 0.0
  %143 = vmatprep.subr.mxu0 0.0
  %144 = vmatpush1.msra.mxu0 0.0
  %145 = vmatprep.subr.mxu0 0.0
  %146 = vmatpush1.msra.mxu0 0.0
  %147 = vmatprep.subr.mxu0 0.0
  %148 = vmatpush1.msra.mxu0 0.0
  %149 = vmatprep.subr.mxu0 0.0
  %150 = vmatpush1.msra.mxu0 0.0
  %151 = vmatprep.subr.mxu0 0.0
  %152 = vmatpush1.msra.mxu0 0.0
  %153 = vmatprep.subr.mxu0 0.0
  %154 = vmatpush1.msra.mxu0 0.0
  %155 = vmatprep.subr.mxu0 0.0
  %156 = vmatpush1.msra.mxu0 0.0
  %157 = vmatprep.subr.mxu0 0.0
  %158 = vmatpush1.msra.mxu0 0.0
  %159 = vmatprep.subr.mxu0 0.0
  %160 = vmatpush1.msra.mxu0 0.0
  %161 = vmatprep.subr.mxu0 0.0
  %162 = vmatpush1.msra.mxu0 0.0
  %163 = vmatprep.subr.mxu0 0.0
  %164 = vmatpush1.msra.mxu0 0.0
  %165 = vmatprep.subr.mxu0 0.0
  %166 = vmatpush1.msra.mxu0 0.0
  %167 = vmatprep.subr.mxu0 0.0
  %168 = vmatpush1.msra.mxu0 0.0
  %169 = vmatprep.subr.mxu0 0.0
  %170 = vmatpush1.msra.mxu0 0.0
  %171 = vmatprep.subr.mxu0 0.0
  %172 = vmatpush1.msra.mxu0 0.0
  %173 = vmatprep.subr.mxu0 0.0
  %174 = vmatpush1.msra.mxu0 0.0
  %175 = vmatprep.subr.mxu0 0.0
  %176 = vmatpush1.msra.mxu0 0.0
  %177 = vmatprep.subr.mxu0 0.0
  %178 = vmatpush1.msra.mxu0 0.0
  %179 = vmatprep.subr.mxu0 0.0
  %180 = vmatpush1.msra.mxu0 0.0
  %181 = vmatprep.subr.mxu0 0.0
  %182 = vmatpush1.msra.mxu0 0.0
  %183 = vmatprep.subr.mxu0 0.0
  %184 = vmatpush1.msra.mxu0 0.0
  %185 = vmatprep.subr.mxu0 0.0
  %186 = vmatpush1.msra.mxu0 0.0
  %187 = vmatprep.subr.mxu0 0.0
  %188 = vmatpush1.msra.mxu0 0.0
  %189 = vmatprep.subr.mxu0 0.0
  %190 = vmatpush1.msra.mxu0 0.0
  %191 = vmatprep.subr.mxu0 0.0
  %192 = vmatpush1.msra.mxu0 0.0
  %193 = vmatprep.subr.mxu0 0.0
  %194 = vmatpush1.msra.mxu0 0.0
  %195 = vmatprep.mubr.f32.mxu0 0.0
  %196 = vmatmul.mubr.f32.gmra.mrb[0].mxu0 %v115
  %v197 = vpop.f32.mrb[0].mxu0
  %v198 = vadd.f32 %v77, %v197
  %v199 = vpop.f32.mrb[0].mxu0
  %200 = vmatprep.mubr.f32.mxu0 0.0
  %201 = vmatmul.mubr.f32.gmra.mrb[0].mxu0 %v117
  %v202 = vpop.f32.mrb[0].mxu0
  %v203 = vadd.f32 %v82, %v202
  %v204 = vpop.f32.mrb[0].mxu0
  %205 = vmatprep.mubr.f32.mxu0 0.0
  %206 = vmatmul.mubr.f32.gmra.mrb[0].mxu0 %v119
  %v207 = vpop.f32.mrb[0].mxu0
  %v208 = vadd.f32 %v87, %v207
  %v209 = vpop.f32.mrb[0].mxu0
  %210 = vmatprep.mubr.f32.mxu0 0.0
  %211 = vmatmul.mubr.f32.gmra.mrb[0].mxu0 %v121
  %v212 = vpop.f32.mrb[0].mxu0
  %v213 = vadd.f32 %v92, %v212
  %v214 = vpop.f32.mrb[0].mxu0
  %215 = vmatprep.mubr.f32.mxu0 0.0
  %216 = vmatmul.mubr.f32.gmra.mrb[0].mxu0 %v123
  %v217 = vpop.f32.mrb[0].mxu0
  %v218 = vadd.f32 %v97, %v217
  %v219 = vpop.f32.mrb[0].mxu0
  %220 = vmatprep.mubr.f32.mxu0 0.0
  %221 = vmatmul.mubr.f32.gmra.mrb[0].mxu0 %v125
  %v222 = vpop.f32.mrb[0].mxu0
  %v223 = vadd.f32 %v102, %v222
  %v224 = vpop.f32.mrb[0].mxu0
  %225 = vmatprep.mubr.f32.mxu0 0.0
  %226 = vmatmul.mubr.f32.gmra.mrb[0].mxu0 %v127
  %v227 = vpop.f32.mrb[0].mxu0
  %v228 = vadd.f32 %v107, %v227
  %v229 = vpop.f32.mrb[0].mxu0
  %230 = vmatprep.mubr.f32.mxu0 0.0
  %231 = vmatmul.mubr.f32.gmra.mrb[0].mxu0 %v129
  %v232 = vpop.f32.mrb[0].mxu0
  %v233 = vadd.f32 %v112, %v232
  %v234 = vpop.f32.mrb[0].mxu0
  %235 = vdwg.mxu0
  %v237 = vsel %vm114, %v19, 0
  %v240 = vsel %vm114, %v20, 0
  %v243 = vsel %vm114, %v21, 0
  %v246 = vsel %vm114, %v22, 0
  %v249 = vsel %vm114, %v23, 0
  %v252 = vsel %vm114, %v24, 0
  %v255 = vsel %vm114, %v25, 0
  %v258 = vsel %vm114, %v26, 0
  %260 = vmatprep.subr.mxu0 0.0
  %261 = vmatpush1.msra.mxu0 0.0
  %262 = vmatprep.subr.mxu0 0.0
  %263 = vmatpush1.msra.mxu0 0.0
  %264 = vmatprep.subr.mxu0 0.0
  %265 = vmatpush1.msra.mxu0 0.0
  %266 = vmatprep.subr.mxu0 0.0
  %267 = vmatpush1.msra.mxu0 0.0
  %268 = vmatprep.subr.mxu0 0.0
  %269 = vmatpush1.msra.mxu0 0.0
  %270 = vmatprep.subr.mxu0 0.0
  %271 = vmatpush1.msra.mxu0 0.0
  %272 = vmatprep.subr.mxu0 0.0
  %273 = vmatpush1.msra.mxu0 0.0
  %274 = vmatprep.subr.mxu0 0.0
  %275 = vmatpush1.msra.mxu0 0.0
  %276 = vmatprep.subr.mxu0 0.0
  %277 = vmatpush1.msra.mxu0 0.0
  %278 = vmatprep.subr.mxu0 0.0
  %279 = vmatpush1.msra.mxu0 0.0
  %280 = vmatprep.subr.mxu0 0.0
  %281 = vmatpush1.msra.mxu0 0.0
  %282 = vmatprep.subr.mxu0 0.0
  %283 = vmatpush1.msra.mxu0 0.0
  %284 = vmatprep.subr.mxu0 0.0
  %285 = vmatpush1.msra.mxu0 0.0
  %286 = vmatprep.subr.mxu0 0.0
  %287 = vmatpush1.msra.mxu0 0.0
  %288 = vmatprep.subr.mxu0 0.0
  %289 = vmatpush1.msra.mxu0 0.0
  %290 = vmatprep.subr.mxu0 0.0
  %291 = vmatpush1.msra.mxu0 0.0
  %292 = vmatprep.subr.mxu0 0.0
  %293 = vmatpush1.msra.mxu0 0.0
  %294 = vmatprep.subr.mxu0 0.0
  %295 = vmatpush1.msra.mxu0 0.0
  %296 = vmatprep.subr.mxu0 0.0
  %297 = vmatpush1.msra.mxu0 0.0
  %298 = vmatprep.subr.mxu0 0.0
  %299 = vmatpush1.msra.mxu0 0.0
  %300 = vmatprep.subr.mxu0 0.0
  %301 = vmatpush1.msra.mxu0 0.0
  %302 = vmatprep.subr.mxu0 0.0
  %303 = vmatpush1.msra.mxu0 0.0
  %304 = vmatprep.subr.mxu0 0.0
  %305 = vmatpush1.msra.mxu0 0.0
  %306 = vmatprep.subr.mxu0 0.0
  %307 = vmatpush1.msra.mxu0 0.0
  %308 = vmatprep.subr.mxu0 0.0
  %309 = vmatpush1.msra.mxu0 0.0
  %310 = vmatprep.subr.mxu0 0.0
  %311 = vmatpush1.msra.mxu0 0.0
  %312 = vmatprep.subr.mxu0 0.0
  %313 = vmatpush1.msra.mxu0 0.0
  %314 = vmatprep.subr.mxu0 0.0
  %315 = vmatpush1.msra.mxu0 0.0
  %316 = vmatprep.subr.mxu0 0.0
  %317 = vmatpush1.msra.mxu0 0.0
  %318 = vmatprep.subr.mxu0 0.0
  %319 = vmatpush1.msra.mxu0 0.0
  %320 = vmatprep.subr.mxu0 0.0
  %321 = vmatpush1.msra.mxu0 0.0
  %322 = vmatprep.subr.mxu0 0.0
  %323 = vmatpush1.msra.mxu0 0.0
  %324 = vmatprep.mubr.f32.mxu0 0.0
  %325 = vmatmul.mubr.f32.gmra.mrb[0].mxu0 %v237
  %v326 = vpop.f32.mrb[0].mxu0
  %v327 = vadd.f32 0.0, %v326
  %v328 = vpop.f32.mrb[0].mxu0
  %329 = vmatprep.mubr.f32.mxu0 0.0
  %330 = vmatmul.mubr.f32.gmra.mrb[0].mxu0 %v240
  %v331 = vpop.f32.mrb[0].mxu0
  %v332 = vadd.f32 0.0, %v331
  %v333 = vpop.f32.mrb[0].mxu0
  %334 = vmatprep.mubr.f32.mxu0 0.0
  %335 = vmatmul.mubr.f32.gmra.mrb[0].mxu0 %v243
  %v336 = vpop.f32.mrb[0].mxu0
  %v337 = vadd.f32 0.0, %v336
  %v338 = vpop.f32.mrb[0].mxu0
  %339 = vmatprep.mubr.f32.mxu0 0.0
  %340 = vmatmul.mubr.f32.gmra.mrb[0].mxu0 %v246
  %v341 = vpop.f32.mrb[0].mxu0
  %v342 = vadd.f32 0.0, %v341
  %v343 = vpop.f32.mrb[0].mxu0
  %344 = vmatprep.mubr.f32.mxu0 0.0
  %345 = vmatmul.mubr.f32.gmra.mrb[0].mxu0 %v249
  %v346 = vpop.f32.mrb[0].mxu0
  %v347 = vadd.f32 0.0, %v346
  %v348 = vpop.f32.mrb[0].mxu0
  %349 = vmatprep.mubr.f32.mxu0 0.0
  %350 = vmatmul.mubr.f32.gmra.mrb[0].mxu0 %v252
  %v351 = vpop.f32.mrb[0].mxu0
  %v352 = vadd.f32 0.0, %v351
  %v353 = vpop.f32.mrb[0].mxu0
  %354 = vmatprep.mubr.f32.mxu0 0.0
  %355 = vmatmul.mubr.f32.gmra.mrb[0].mxu0 %v255
  %v356 = vpop.f32.mrb[0].mxu0
  %v357 = vadd.f32 0.0, %v356
  %v358 = vpop.f32.mrb[0].mxu0
  %359 = vmatprep.mubr.f32.mxu0 0.0
  %360 = vmatmul.mubr.f32.gmra.mrb[0].mxu0 %v258
  %v361 = vpop.f32.mrb[0].mxu0
  %v362 = vadd.f32 0.0, %v361
  %v363 = vpop.f32.mrb[0].mxu0
  %364 = vdwg.mxu0
  %v365 = vadd.f32 %v198, %v327
  %v366 = vadd.f32 %v203, %v332
  %v367 = vadd.f32 %v208, %v337
  %v368 = vadd.f32 %v213, %v342
  %v369 = vadd.f32 %v218, %v347
  %v370 = vadd.f32 %v223, %v352
  %v371 = vadd.f32 %v228, %v357
  %v372 = vadd.f32 %v233, %v362
  %v373 = vxor.u32 %v365, 2147483648
  %v374 = vxor.u32 %v366, 2147483648
  %v375 = vmul.f32 %v373, 1.442695
  %v376 = vpow.pop %v375
  %v377 = vmul.f32 %v374, 1.442695
  %v378 = vpow.pop %v377
  %v379 = vadd.f32 %v376, 1.0
  %v380 = vadd.f32 %v378, 1.0
  %v381 = vrcp.pop %v379
  %v382 = vmul.f32 1.0, %v381
  %v383 = vrcp.pop %v380
  %v384 = vmul.f32 1.0, %v383
  %v385 = vxor.u32 %v367, 2147483648
  %v386 = vxor.u32 %v368, 2147483648
  %v387 = vmul.f32 %v385, 1.442695
  %v388 = vpow.pop %v387
  %v389 = vmul.f32 %v386, 1.442695
  %v390 = vpow.pop %v389
  %v391 = vadd.f32 %v388, 1.0
  %v392 = vadd.f32 %v390, 1.0
  %v393 = vrcp.pop %v391
  %v394 = vmul.f32 1.0, %v393
  %v395 = vrcp.pop %v392
  %v396 = vmul.f32 1.0, %v395
  %v397 = vtanh.pop %v369
  %v398 = vtanh.pop %v370
  %v399 = vxor.u32 %v371, 2147483648
  %v400 = vxor.u32 %v372, 2147483648
  %v401 = vmul.f32 %v399, 1.442695
  %v402 = vpow.pop %v401
  %v403 = vmul.f32 %v400, 1.442695
  %v404 = vpow.pop %v403
  %v405 = vadd.f32 %v402, 1.0
  %v406 = vadd.f32 %v404, 1.0
  %v407 = vrcp.pop %v405
  %v408 = vmul.f32 1.0, %v407
  %v409 = vrcp.pop %v406
  %v410 = vmul.f32 1.0, %v409
  %v411 = vmul.f32 %v394, 0.0
  %v412 = vmul.f32 %v396, 0.0
  %v413 = vmul.f32 %v382, %v397
  %v414 = vmul.f32 %v384, %v398
  %v415 = vadd.f32 %v411, %v413
  %v416 = vadd.f32 %v412, %v414
  %v417 = vtanh.pop %v415
  %v418 = vtanh.pop %v416
  %v419 = vmul.f32 %v408, %v417
  %v420 = vmul.f32 %v410, %v418
  %s421 = scalar_lea.vmem %s0, 2
  %v422 = vld [vmem:[%s421] sm:$0x3]
  %v423 = vlaneseq
  %v424 = vshrl.u32 %v423, 7
  %v425 = vsub.s32 0, %v424
  %v426 = vrot.slane %v422, %v425
  %v427 = vmul.f32 %v33, %v426
  %v428 = vmul.f32 %v38, %v426
  %v429 = vlaneseq
  %v430 = vshrl.u32 %v429, 7
  %v431 = vsub.s32 1, %v430
  %v432 = vrot.slane %v422, %v431
  %v433 = vmul.f32 %v48, %v432
  %v434 = vmul.f32 %v52, %v432
  %v435 = vadd.f32 %v427, %v433
  %v436 = vadd.f32 %v428, %v434
  %v437 = vadd.f32 %v435, %v64
  %v438 = vadd.f32 %v436, %v68
  %v439 = vmax.f32 %v437, 0.0
  %v440 = vmax.f32 %v438, 0.0
  %441 = vmatprep.subr.mxu0 0.0
  %442 = vmatpush1.msra.mxu0 %v439
  %443 = vmatprep.subr.mxu0 0.0
  %444 = vmatpush1.msra.mxu0 %v440
  %445 = vmatprep.subr.mxu0 0.0
  %446 = vmatpush1.msra.mxu0 0.0
  %447 = vmatprep.subr.mxu0 0.0
  %448 = vmatpush1.msra.mxu0 0.0
  %449 = vmatprep.subr.mxu0 0.0
  %450 = vmatpush1.msra.mxu0 0.0
  %451 = vmatprep.subr.mxu0 0.0
  %452 = vmatpush1.msra.mxu0 0.0
  %453 = vmatprep.subr.mxu0 0.0
  %454 = vmatpush1.msra.mxu0 0.0
  %455 = vmatprep.subr.mxu0 0.0
  %456 = vmatpush1.msra.mxu0 0.0
  %457 = vmatprep.subr.mxu0 0.0
  %458 = vmatpush1.msra.mxu0 0.0
  %459 = vmatprep.subr.mxu0 0.0
  %460 = vmatpush1.msra.mxu0 0.0
  %461 = vmatprep.subr.mxu0 0.0
  %462 = vmatpush1.msra.mxu0 0.0
  %463 = vmatprep.subr.mxu0 0.0
  %464 = vmatpush1.msra.mxu0 0.0
  %465 = vmatprep.subr.mxu0 0.0
  %466 = vmatpush1.msra.mxu0 0.0
  %467 = vmatprep.subr.mxu0 0.0
  %468 = vmatpush1.msra.mxu0 0.0
  %469 = vmatprep.subr.mxu0 0.0
  %470 = vmatpush1.msra.mxu0 0.0
  %471 = vmatprep.subr.mxu0 0.0
  %472 = vmatpush1.msra.mxu0 0.0
  %473 = vmatprep.subr.mxu0 0.0
  %474 = vmatpush1.msra.mxu0 0.0
  %475 = vmatprep.subr.mxu0 0.0
  %476 = vmatpush1.msra.mxu0 0.0
  %477 = vmatprep.subr.mxu0 0.0
  %478 = vmatpush1.msra.mxu0 0.0
  %479 = vmatprep.subr.mxu0 0.0
  %480 = vmatpush1.msra.mxu0 0.0
  %481 = vmatprep.subr.mxu0 0.0
  %482 = vmatpush1.msra.mxu0 0.0
  %483 = vmatprep.subr.mxu0 0.0
  %484 = vmatpush1.msra.mxu0 0.0
  %485 = vmatprep.subr.mxu0 0.0
  %486 = vmatpush1.msra.mxu0 0.0
  %487 = vmatprep.subr.mxu0 0.0
  %488 = vmatpush1.msra.mxu0 0.0
  %489 = vmatprep.subr.mxu0 0.0
  %490 = vmatpush1.msra.mxu0 0.0
  %491 = vmatprep.subr.mxu0 0.0
  %492 = vmatpush1.msra.mxu0 0.0
  %493 = vmatprep.subr.mxu0 0.0
  %494 = vmatpush1.msra.mxu0 0.0
  %495 = vmatprep.subr.mxu0 0.0
  %496 = vmatpush1.msra.mxu0 0.0
  %497 = vmatprep.subr.mxu0 0.0
  %498 = vmatpush1.msra.mxu0 0.0
  %499 = vmatprep.subr.mxu0 0.0
  %500 = vmatpush1.msra.mxu0 0.0
  %501 = vmatprep.subr.mxu0 0.0
  %502 = vmatpush1.msra.mxu0 0.0
  %503 = vmatprep.subr.mxu0 0.0
  %504 = vmatpush1.msra.mxu0 0.0
  %505 = vmatprep.mubr.f32.mxu0 0.0
  %506 = vmatmul.mubr.f32.gmra.mrb[0].mxu0 %v115
  %v507 = vpop.f32.mrb[0].mxu0
  %v508 = vadd.f32 %v77, %v507
  %v509 = vpop.f32.mrb[0].mxu0
  %510 = vmatprep.mubr.f32.mxu0 0.0
  %511 = vmatmul.mubr.f32.gmra.mrb[0].mxu0 %v117
  %v512 = vpop.f32.mrb[0].mxu0
  %v513 = vadd.f32 %v82, %v512
  %v514 = vpop.f32.mrb[0].mxu0
  %515 = vmatprep.mubr.f32.mxu0 0.0
  %516 = vmatmul.mubr.f32.gmra.mrb[0].mxu0 %v119
  %v517 = vpop.f32.mrb[0].mxu0
  %v518 = vadd.f32 %v87, %v517
  %v519 = vpop.f32.mrb[0].mxu0
  %520 = vmatprep.mubr.f32.mxu0 0.0
  %521 = vmatmul.mubr.f32.gmra.mrb[0].mxu0 %v121
  %v522 = vpop.f32.mrb[0].mxu0
  %v523 = vadd.f32 %v92, %v522
  %v524 = vpop.f32.mrb[0].mxu0
  %525 = vmatprep.mubr.f32.mxu0 0.0
  %526 = vmatmul.mubr.f32.gmra.mrb[0].mxu0 %v123
  %v527 = vpop.f32.mrb[0].mxu0
  %v528 = vadd.f32 %v97, %v527
  %v529 = vpop.f32.mrb[0].mxu0
  %530 = vmatprep.mubr.f32.mxu0 0.0
  %531 = vmatmul.mubr.f32.gmra.mrb[0].mxu0 %v125
  %v532 = vpop.f32.mrb[0].mxu0
  %v533 = vadd.f32 %v102, %v532
  %v534 = vpop.f32.mrb[0].mxu0
  %535 = vmatprep.mubr.f32.mxu0 0.0
  %536 = vmatmul.mubr.f32.gmra.mrb[0].mxu0 %v127
  %v537 = vpop.f32.mrb[0].mxu0
  %v538 = vadd.f32 %v107, %v537
  %v539 = vpop.f32.mrb[0].mxu0
  %540 = vmatprep.mubr.f32.mxu0 0.0
  %541 = vmatmul.mubr.f32.gmra.mrb[0].mxu0 %v129
  %v542 = vpop.f32.mrb[0].mxu0
  %v543 = vadd.f32 %v112, %v542
  %v544 = vpop.f32.mrb[0].mxu0
  %545 = vdwg.mxu0
  %546 = vmatprep.subr.mxu0 0.0
  %547 = vmatpush1.msra.mxu0 %v419
  %548 = vmatprep.subr.mxu0 0.0
  %549 = vmatpush1.msra.mxu0 %v420
  %550 = vmatprep.subr.mxu0 0.0
  %551 = vmatpush1.msra.mxu0 0.0
  %552 = vmatprep.subr.mxu0 0.0
  %553 = vmatpush1.msra.mxu0 0.0
  %554 = vmatprep.subr.mxu0 0.0
  %555 = vmatpush1.msra.mxu0 0.0
  %556 = vmatprep.subr.mxu0 0.0
  %557 = vmatpush1.msra.mxu0 0.0
  %558 = vmatprep.subr.mxu0 0.0
  %559 = vmatpush1.msra.mxu0 0.0
  %560 = vmatprep.subr.mxu0 0.0
  %561 = vmatpush1.msra.mxu0 0.0
  %562 = vmatprep.subr.mxu0 0.0
  %563 = vmatpush1.msra.mxu0 0.0
  %564 = vmatprep.subr.mxu0 0.0
  %565 = vmatpush1.msra.mxu0 0.0
  %566 = vmatprep.subr.mxu0 0.0
  %567 = vmatpush1.msra.mxu0 0.0
  %568 = vmatprep.subr.mxu0 0.0
  %569 = vmatpush1.msra.mxu0 0.0
  %570 = vmatprep.subr.mxu0 0.0
  %571 = vmatpush1.msra.mxu0 0.0
  %572 = vmatprep.subr.mxu0 0.0
  %573 = vmatpush1.msra.mxu0 0.0
  %574 = vmatprep.subr.mxu0 0.0
  %575 = vmatpush1.msra.mxu0 0.0
  %576 = vmatprep.subr.mxu0 0.0
  %577 = vmatpush1.msra.mxu0 0.0
  %578 = vmatprep.subr.mxu0 0.0
  %579 = vmatpush1.msra.mxu0 0.0
  %580 = vmatprep.subr.mxu0 0.0
  %581 = vmatpush1.msra.mxu0 0.0
  %582 = vmatprep.subr.mxu0 0.0
  %583 = vmatpush1.msra.mxu0 0.0
  %584 = vmatprep.subr.mxu0 0.0
  %585 = vmatpush1.msra.mxu0 0.0
  %586 = vmatprep.subr.mxu0 0.0
  %587 = vmatpush1.msra.mxu0 0.0
  %588 = vmatprep.subr.mxu0 0.0
  %589 = vmatpush1.msra.mxu0 0.0
  %590 = vmatprep.subr.mxu0 0.0
  %591 = vmatpush1.msra.mxu0 0.0
  %592 = vmatprep.subr.mxu0 0.0
  %593 = vmatpush1.msra.mxu0 0.0
  %594 = vmatprep.subr.mxu0 0.0
  %595 = vmatpush1.msra.mxu0 0.0
  %596 = vmatprep.subr.mxu0 0.0
  %597 = vmatpush1.msra.mxu0 0.0
  %598 = vmatprep.subr.mxu0 0.0
  %599 = vmatpush1.msra.mxu0 0.0
  %600 = vmatprep.subr.mxu0 0.0
  %601 = vmatpush1.msra.mxu0 0.0
  %602 = vmatprep.subr.mxu0 0.0
  %603 = vmatpush1.msra.mxu0 0.0
  %604 = vmatprep.subr.mxu0 0.0
  %605 = vmatpush1.msra.mxu0 0.0
  %606 = vmatprep.subr.mxu0 0.0
  %607 = vmatpush1.msra.mxu0 0.0
  %608 = vmatprep.subr.mxu0 0.0
  %609 = vmatpush1.msra.mxu0 0.0
  %610 = vmatprep.mubr.f32.mxu0 0.0
  %611 = vmatmul.mubr.f32.gmra.mrb[0].mxu0 %v237
  %v612 = vpop.f32.mrb[0].mxu0
  %v613 = vadd.f32 0.0, %v612
  %v614 = vpop.f32.mrb[0].mxu0
  %615 = vmatprep.mubr.f32.mxu0 0.0
  %616 = vmatmul.mubr.f32.gmra.mrb[0].mxu0 %v240
  %v617 = vpop.f32.mrb[0].mxu0
  %v618 = vadd.f32 0.0, %v617
  %v619 = vpop.f32.mrb[0].mxu0
  %620 = vmatprep.mubr.f32.mxu0 0.0
  %621 = vmatmul.mubr.f32.gmra.mrb[0].mxu0 %v243
  %v622 = vpop.f32.mrb[0].mxu0
  %v623 = vadd.f32 0.0, %v622
  %v624 = vpop.f32.mrb[0].mxu0
  %625 = vmatprep.mubr.f32.mxu0 0.0
  %626 = vmatmul.mubr.f32.gmra.mrb[0].mxu0 %v246
  %v627 = vpop.f32.mrb[0].mxu0
  %v628 = vadd.f32 0.0, %v627
  %v629 = vpop.f32.mrb[0].mxu0
  %630 = vmatprep.mubr.f32.mxu0 0.0
  %631 = vmatmul.mubr.f32.gmra.mrb[0].mxu0 %v249
  %v632 = vpop.f32.mrb[0].mxu0
  %v633 = vadd.f32 0.0, %v632
  %v634 = vpop.f32.mrb[0].mxu0
  %635 = vmatprep.mubr.f32.mxu0 0.0
  %636 = vmatmul.mubr.f32.gmra.mrb[0].mxu0 %v252
  %v637 = vpop.f32.mrb[0].mxu0
  %v638 = vadd.f32 0.0, %v637
  %v639 = vpop.f32.mrb[0].mxu0
  %640 = vmatprep.mubr.f32.mxu0 0.0
  %641 = vmatmul.mubr.f32.gmra.mrb[0].mxu0 %v255
  %v642 = vpop.f32.mrb[0].mxu0
  %v643 = vadd.f32 0.0, %v642
  %v644 = vpop.f32.mrb[0].mxu0
  %645 = vmatprep.mubr.f32.mxu0 0.0
  %646 = vmatmul.mubr.f32.gmra.mrb[0].mxu0 %v258
  %v647 = vpop.f32.mrb[0].mxu0
  %v648 = vadd.f32 0.0, %v647
  %v649 = vpop.f32.mrb[0].mxu0
  %650 = vdwg.mxu0
  %v651 = vadd.f32 %v508, %v613
  %v652 = vadd.f32 %v513, %v618
  %v653 = vadd.f32 %v518, %v623
  %v654 = vadd.f32 %v523, %v628
  %v655 = vadd.f32 %v528, %v633
  %v656 = vadd.f32 %v533, %v638
  %v657 = vadd.f32 %v538, %v643
  %v658 = vadd.f32 %v543, %v648
  %v659 = vxor.u32 %v651, 2147483648
  %v660 = vxor.u32 %v652, 2147483648
  %v661 = vmul.f32 %v659, 1.442695
  %v662 = vpow.pop %v661
  %v663 = vmul.f32 %v660, 1.442695
  %v664 = vpow.pop %v663
  %v665 = vadd.f32 %v662, 1.0
  %v666 = vadd.f32 %v664, 1.0
  %v667 = vrcp.pop %v665
  %v668 = vmul.f32 1.0, %v667
  %v669 = vrcp.pop %v666
  %v670 = vmul.f32 1.0, %v669
  %v671 = vxor.u32 %v653, 2147483648
  %v672 = vxor.u32 %v654, 2147483648
  %v673 = vmul.f32 %v671, 1.442695
  %v674 = vpow.pop %v673
  %v675 = vmul.f32 %v672, 1.442695
  %v676 = vpow.pop %v675
  %v677 = vadd.f32 %v674, 1.0
  %v678 = vadd.f32 %v676, 1.0
  %v679 = vrcp.pop %v677
  %v680 = vmul.f32 1.0, %v679
  %v681 = vrcp.pop %v678
  %v682 = vmul.f32 1.0, %v681
  %v683 = vtanh.pop %v655
  %v684 = vtanh.pop %v656
  %v685 = vxor.u32 %v657, 2147483648
  %v686 = vxor.u32 %v658, 2147483648
  %v687 = vmul.f32 %v685, 1.442695
  %v688 = vpow.pop %v687
  %v689 = vmul.f32 %v686, 1.442695
  %v690 = vpow.pop %v689
  %v691 = vadd.f32 %v688, 1.0
  %v692 = vadd.f32 %v690, 1.0
  %v693 = vrcp.pop %v691
  %v694 = vmul.f32 1.0, %v693
  %v695 = vrcp.pop %v692
  %v696 = vmul.f32 1.0, %v695
  %v697 = vmul.f32 %v680, %v415
  %v698 = vmul.f32 %v682, %v416
  %v699 = vmul.f32 %v668, %v683
  %v700 = vmul.f32 %v670, %v684
  %v701 = vadd.f32 %v697, %v699
  %v702 = vadd.f32 %v698, %v700
  %v703 = vtanh.pop %v701
  %v704 = vtanh.pop %v702
  %v705 = vmul.f32 %v694, %v703
  %v706 = vmul.f32 %v696, %v704
  %s707 = scalar_lea.vmem %s0, 4
  %v708 = vld [vmem:[%s707] sm:$0x3]
  %v709 = vlaneseq
  %v710 = vshrl.u32 %v709, 7
  %v711 = vsub.s32 0, %v710
  %v712 = vrot.slane %v708, %v711
  %v713 = vmul.f32 %v33, %v712
  %v714 = vmul.f32 %v38, %v712
  %v715 = vlaneseq
  %v716 = vshrl.u32 %v715, 7
  %v717 = vsub.s32 1, %v716
  %v718 = vrot.slane %v708, %v717
  %v719 = vmul.f32 %v48, %v718
  %v720 = vmul.f32 %v52, %v718
  %v721 = vadd.f32 %v713, %v719
  %v722 = vadd.f32 %v714, %v720
  %v723 = vadd.f32 %v721, %v64
  %v724 = vadd.f32 %v722, %v68
  %v725 = vmax.f32 %v723, 0.0
  %v726 = vmax.f32 %v724, 0.0
  %727 = vmatprep.subr.mxu0 0.0
  %728 = vmatpush1.msra.mxu0 %v725
  %729 = vmatprep.subr.mxu0 0.0
  %730 = vmatpush1.msra.mxu0 %v726
  %731 = vmatprep.subr.mxu0 0.0
  %732 = vmatpush1.msra.mxu0 0.0
  %733 = vmatprep.subr.mxu0 0.0
  %734 = vmatpush1.msra.mxu0 0.0
  %735 = vmatprep.subr.mxu0 0.0
  %736 = vmatpush1.msra.mxu0 0.0
  %737 = vmatprep.subr.mxu0 0.0
  %738 = vmatpush1.msra.mxu0 0.0
  %739 = vmatprep.subr.mxu0 0.0
  %740 = vmatpush1.msra.mxu0 0.0
  %741 = vmatprep.subr.mxu0 0.0
  %742 = vmatpush1.msra.mxu0 0.0
  %743 = vmatprep.subr.mxu0 0.0
  %744 = vmatpush1.msra.mxu0 0.0
  %745 = vmatprep.subr.mxu0 0.0
  %746 = vmatpush1.msra.mxu0 0.0
  %747 = vmatprep.subr.mxu0 0.0
  %748 = vmatpush1.msra.mxu0 0.0
  %749 = vmatprep.subr.mxu0 0.0
  %750 = vmatpush1.msra.mxu0 0.0
  %751 = vmatprep.subr.mxu0 0.0
  %752 = vmatpush1.msra.mxu0 0.0
  %753 = vmatprep.subr.mxu0 0.0
  %754 = vmatpush1.msra.mxu0 0.0
  %755 = vmatprep.subr.mxu0 0.0
  %756 = vmatpush1.msra.mxu0 0.0
  %757 = vmatprep.subr.mxu0 0.0
  %758 = vmatpush1.msra.mxu0 0.0
  %759 = vmatprep.subr.mxu0 0.0
  %760 = vmatpush1.msra.mxu0 0.0
  %761 = vmatprep.subr.mxu0 0.0
  %762 = vmatpush1.msra.mxu0 0.0
  %763 = vmatprep.subr.mxu0 0.0
  %764 = vmatpush1.msra.mxu0 0.0
  %765 = vmatprep.subr.mxu0 0.0
  %766 = vmatpush1.msra.mxu0 0.0
  %767 = vmatprep.subr.mxu0 0.0
  %768 = vmatpush1.msra.mxu0 0.0
  %769 = vmatprep.subr.mxu0 0.0
  %770 = vmatpush1.msra.mxu0 0.0
  %771 = vmatprep.subr.mxu0 0.0
  %772 = vmatpush1.msra.mxu0 0.0
  %773 = vmatprep.subr.mxu0 0.0
  %774 = vmatpush1.msra.mxu0 0.0
  %775 = vmatprep.subr.mxu0 0.0
  %776 = vmatpush1.msra.mxu0 0.0
  %777 = vmatprep.subr.mxu0 0.0
  %778 = vmatpush1.msra.mxu0 0.0
  %779 = vmatprep.subr.mxu0 0.0
  %780 = vmatpush1.msra.mxu0 0.0
  %781 = vmatprep.subr.mxu0 0.0
  %782 = vmatpush1.msra.mxu0 0.0
  %783 = vmatprep.subr.mxu0 0.0
  %784 = vmatpush1.msra.mxu0 0.0
  %785 = vmatprep.subr.mxu0 0.0
  %786 = vmatpush1.msra.mxu0 0.0
  %787 = vmatprep.subr.mxu0 0.0
  %788 = vmatpush1.msra.mxu0 0.0
  %789 = vmatprep.subr.mxu0 0.0
  %790 = vmatpush1.msra.mxu0 0.0
  %791 = vmatprep.mubr.f32.mxu0 0.0
  %792 = vmatmul.mubr.f32.gmra.mrb[0].mxu0 %v115
  %v793 = vpop.f32.mrb[0].mxu0
  %v794 = vadd.f32 %v77, %v793
  %v795 = vpop.f32.mrb[0].mxu0
  %796 = vmatprep.mubr.f32.mxu0 0.0
  %797 = vmatmul.mubr.f32.gmra.mrb[0].mxu0 %v117
  %v798 = vpop.f32.mrb[0].mxu0
  %v799 = vadd.f32 %v82, %v798
  %v800 = vpop.f32.mrb[0].mxu0
  %801 = vmatprep.mubr.f32.mxu0 0.0
  %802 = vmatmul.mubr.f32.gmra.mrb[0].mxu0 %v119
  %v803 = vpop.f32.mrb[0].mxu0
  %v804 = vadd.f32 %v87, %v803
  %v805 = vpop.f32.mrb[0].mxu0
  %806 = vmatprep.mubr.f32.mxu0 0.0
  %807 = vmatmul.mubr.f32.gmra.mrb[0].mxu0 %v121
  %v808 = vpop.f32.mrb[0].mxu0
  %v809 = vadd.f32 %v92, %v808
  %v810 = vpop.f32.mrb[0].mxu0
  %811 = vmatprep.mubr.f32.mxu0 0.0
  %812 = vmatmul.mubr.f32.gmra.mrb[0].mxu0 %v123
  %v813 = vpop.f32.mrb[0].mxu0
  %v814 = vadd.f32 %v97, %v813
  %v815 = vpop.f32.mrb[0].mxu0
  %816 = vmatprep.mubr.f32.mxu0 0.0
  %817 = vmatmul.mubr.f32.gmra.mrb[0].mxu0 %v125
  %v818 = vpop.f32.mrb[0].mxu0
  %v819 = vadd.f32 %v102, %v818
  %v820 = vpop.f32.mrb[0].mxu0
  %821 = vmatprep.mubr.f32.mxu0 0.0
  %822 = vmatmul.mubr.f32.gmra.mrb[0].mxu0 %v127
  %v823 = vpop.f32.mrb[0].mxu0
  %v824 = vadd.f32 %v107, %v823
  %v825 = vpop.f32.mrb[0].mxu0
  %826 = vmatprep.mubr.f32.mxu0 0.0
  %827 = vmatmul.mubr.f32.gmra.mrb[0].mxu0 %v129
  %v828 = vpop.f32.mrb[0].mxu0
  %v829 = vadd.f32 %v112, %v828
  %v830 = vpop.f32.mrb[0].mxu0
  %831 = vdwg.mxu0
  %832 = vmatprep.subr.mxu0 0.0
  %833 = vmatpush1.msra.mxu0 %v705
  %834 = vmatprep.subr.mxu0 0.0
  %835 = vmatpush1.msra.mxu0 %v706
  %836 = vmatprep.subr.mxu0 0.0
  %837 = vmatpush1.msra.mxu0 0.0
  %838 = vmatprep.subr.mxu0 0.0
  %839 = vmatpush1.msra.mxu0 0.0
  %840 = vmatprep.subr.mxu0 0.0
  %841 = vmatpush1.msra.mxu0 0.0
  %842 = vmatprep.subr.mxu0 0.0
  %843 = vmatpush1.msra.mxu0 0.0
  %844 = vmatprep.subr.mxu0 0.0
  %845 = vmatpush1.msra.mxu0 0.0
  %846 = vmatprep.subr.mxu0 0.0
  %847 = vmatpush1.msra.mxu0 0.0
  %848 = vmatprep.subr.mxu0 0.0
  %849 = vmatpush1.msra.mxu0 0.0
  %850 = vmatprep.subr.mxu0 0.0
  %851 = vmatpush1.msra.mxu0 0.0
  %852 = vmatprep.subr.mxu0 0.0
  %853 = vmatpush1.msra.mxu0 0.0
  %854 = vmatprep.subr.mxu0 0.0
  %855 = vmatpush1.msra.mxu0 0.0
  %856 = vmatprep.subr.mxu0 0.0
  %857 = vmatpush1.msra.mxu0 0.0
  %858 = vmatprep.subr.mxu0 0.0
  %859 = vmatpush1.msra.mxu0 0.0
  %860 = vmatprep.subr.mxu0 0.0
  %861 = vmatpush1.msra.mxu0 0.0
  %862 = vmatprep.subr.mxu0 0.0
  %863 = vmatpush1.msra.mxu0 0.0
  %864 = vmatprep.subr.mxu0 0.0
  %865 = vmatpush1.msra.mxu0 0.0
  %866 = vmatprep.subr.mxu0 0.0
  %867 = vmatpush1.msra.mxu0 0.0
  %868 = vmatprep.subr.mxu0 0.0
  %869 = vmatpush1.msra.mxu0 0.0
  %870 = vmatprep.subr.mxu0 0.0
  %871 = vmatpush1.msra.mxu0 0.0
  %872 = vmatprep.subr.mxu0 0.0
  %873 = vmatpush1.msra.mxu0 0.0
  %874 = vmatprep.subr.mxu0 0.0
  %875 = vmatpush1.msra.mxu0 0.0
  %876 = vmatprep.subr.mxu0 0.0
  %877 = vmatpush1.msra.mxu0 0.0
  %878 = vmatprep.subr.mxu0 0.0
  %879 = vmatpush1.msra.mxu0 0.0
  %880 = vmatprep.subr.mxu0 0.0
  %881 = vmatpush1.msra.mxu0 0.0
  %882 = vmatprep.subr.mxu0 0.0
  %883 = vmatpush1.msra.mxu0 0.0
  %884 = vmatprep.subr.mxu0 0.0
  %885 = vmatpush1.msra.mxu0 0.0
  %886 = vmatprep.subr.mxu0 0.0
  %887 = vmatpush1.msra.mxu0 0.0
  %888 = vmatprep.subr.mxu0 0.0
  %889 = vmatpush1.msra.mxu0 0.0
  %890 = vmatprep.subr.mxu0 0.0
  %891 = vmatpush1.msra.mxu0 0.0
  %892 = vmatprep.subr.mxu0 0.0
  %893 = vmatpush1.msra.mxu0 0.0
  %894 = vmatprep.subr.mxu0 0.0
  %895 = vmatpush1.msra.mxu0 0.0
  %896 = vmatprep.mubr.f32.mxu0 0.0
  %897 = vmatmul.mubr.f32.gmra.mrb[0].mxu0 %v237
  %v898 = vpop.f32.mrb[0].mxu0
  %v899 = vadd.f32 0.0, %v898
  %v900 = vpop.f32.mrb[0].mxu0
  %901 = vmatprep.mubr.f32.mxu0 0.0
  %902 = vmatmul.mubr.f32.gmra.mrb[0].mxu0 %v240
  %v903 = vpop.f32.mrb[0].mxu0
  %v904 = vadd.f32 0.0, %v903
  %v905 = vpop.f32.mrb[0].mxu0
  %906 = vmatprep.mubr.f32.mxu0 0.0
  %907 = vmatmul.mubr.f32.gmra.mrb[0].mxu0 %v243
  %v908 = vpop.f32.mrb[0].mxu0
  %v909 = vadd.f32 0.0, %v908
  %v910 = vpop.f32.mrb[0].mxu0
  %911 = vmatprep.mubr.f32.mxu0 0.0
  %912 = vmatmul.mubr.f32.gmra.mrb[0].mxu0 %v246
  %v913 = vpop.f32.mrb[0].mxu0
  %v914 = vadd.f32 0.0, %v913
  %v915 = vpop.f32.mrb[0].mxu0
  %916 = vmatprep.mubr.f32.mxu0 0.0
  %917 = vmatmul.mubr.f32.gmra.mrb[0].mxu0 %v249
  %v918 = vpop.f32.mrb[0].mxu0
  %v919 = vadd.f32 0.0, %v918
  %v920 = vpop.f32.mrb[0].mxu0
  %921 = vmatprep.mubr.f32.mxu0 0.0
  %922 = vmatmul.mubr.f32.gmra.mrb[0].mxu0 %v252
  %v923 = vpop.f32.mrb[0].mxu0
  %v924 = vadd.f32 0.0, %v923
  %v925 = vpop.f32.mrb[0].mxu0
  %926 = vmatprep.mubr.f32.mxu0 0.0
  %927 = vmatmul.mubr.f32.gmra.mrb[0].mxu0 %v255
  %v928 = vpop.f32.mrb[0].mxu0
  %v929 = vadd.f32 0.0, %v928
  %v930 = vpop.f32.mrb[0].mxu0
  %931 = vmatprep.mubr.f32.mxu0 0.0
  %932 = vmatmul.mubr.f32.gmra.mrb[0].mxu0 %v258
  %v933 = vpop.f32.mrb[0].mxu0
  %v934 = vadd.f32 0.0, %v933
  %v935 = vpop.f32.mrb[0].mxu0
  %936 = vdwg.mxu0
  %v937 = vadd.f32 %v794, %v899
  %v938 = vadd.f32 %v799, %v904
  %v939 = vadd.f32 %v804, %v909
  %v940 = vadd.f32 %v809, %v914
  %v941 = vadd.f32 %v814, %v919
  %v942 = vadd.f32 %v819, %v924
  %v943 = vadd.f32 %v824, %v929
  %v944 = vadd.f32 %v829, %v934
  %v945 = vxor.u32 %v937, 2147483648
  %v946 = vxor.u32 %v938, 2147483648
  %v947 = vmul.f32 %v945, 1.442695
  %v948 = vpow.pop %v947
  %v949 = vmul.f32 %v946, 1.442695
  %v950 = vpow.pop %v949
  %v951 = vadd.f32 %v948, 1.0
  %v952 = vadd.f32 %v950, 1.0
  %v953 = vrcp.pop %v951
  %v954 = vmul.f32 1.0, %v953
  %v955 = vrcp.pop %v952
  %v956 = vmul.f32 1.0, %v955
  %v957 = vxor.u32 %v939, 2147483648
  %v958 = vxor.u32 %v940, 2147483648
  %v959 = vmul.f32 %v957, 1.442695
  %v960 = vpow.pop %v959
  %v961 = vmul.f32 %v958, 1.442695
  %v962 = vpow.pop %v961
  %v963 = vadd.f32 %v960, 1.0
  %v964 = vadd.f32 %v962, 1.0
  %v965 = vrcp.pop %v963
  %v966 = vmul.f32 1.0, %v965
  %v967 = vrcp.pop %v964
  %v968 = vmul.f32 1.0, %v967
  %v969 = vtanh.pop %v941
  %v970 = vtanh.pop %v942
  %v971 = vxor.u32 %v943, 2147483648
  %v972 = vxor.u32 %v944, 2147483648
  %v973 = vmul.f32 %v971, 1.442695
  %v974 = vpow.pop %v973
  %v975 = vmul.f32 %v972, 1.442695
  %v976 = vpow.pop %v975
  %v977 = vadd.f32 %v974, 1.0
  %v978 = vadd.f32 %v976, 1.0
  %v979 = vrcp.pop %v977
  %v980 = vmul.f32 1.0, %v979
  %v981 = vrcp.pop %v978
  %v982 = vmul.f32 1.0, %v981
  %v983 = vmul.f32 %v966, %v701
  %v984 = vmul.f32 %v968, %v702
  %v985 = vmul.f32 %v954, %v969
  %v986 = vmul.f32 %v956, %v970
  %v987 = vadd.f32 %v983, %v985
  %v988 = vadd.f32 %v984, %v986
  %v989 = vtanh.pop %v987
  %v990 = vtanh.pop %v988
  %v991 = vmul.f32 %v980, %v989
  %v992 = vmul.f32 %v982, %v990
  %s993 = scalar_lea.vmem %s0, 6
  %v994 = vld [vmem:[%s993] sm:$0x3]
  %v995 = vlaneseq
  %v996 = vshrl.u32 %v995, 7
  %v997 = vsub.s32 0, %v996
  %v998 = vrot.slane %v994, %v997
  %v999 = vmul.f32 %v33, %v998
  %v1000 = vmul.f32 %v38, %v998
  %v1001 = vlaneseq
  %v1002 = vshrl.u32 %v1001, 7
  %v1003 = vsub.s32 1, %v1002
  %v1004 = vrot.slane %v994, %v1003
  %v1005 = vmul.f32 %v48, %v1004
  %v1006 = vmul.f32 %v52, %v1004
  %v1007 = vadd.f32 %v999, %v1005
  %v1008 = vadd.f32 %v1000, %v1006
  %v1009 = vadd.f32 %v1007, %v64
  %v1010 = vadd.f32 %v1008, %v68
  %v1011 = vmax.f32 %v1009, 0.0
  %v1012 = vmax.f32 %v1010, 0.0
  %1013 = vmatprep.subr.mxu0 0.0
  %1014 = vmatpush1.msra.mxu0 %v1011
  %1015 = vmatprep.subr.mxu0 0.0
  %1016 = vmatpush1.msra.mxu0 %v1012
  %1017 = vmatprep.subr.mxu0 0.0
  %1018 = vmatpush1.msra.mxu0 0.0
  %1019 = vmatprep.subr.mxu0 0.0
  %1020 = vmatpush1.msra.mxu0 0.0
  %1021 = vmatprep.subr.mxu0 0.0
  %1022 = vmatpush1.msra.mxu0 0.0
  %1023 = vmatprep.subr.mxu0 0.0
  %1024 = vmatpush1.msra.mxu0 0.0
  %1025 = vmatprep.subr.mxu0 0.0
  %1026 = vmatpush1.msra.mxu0 0.0
  %1027 = vmatprep.subr.mxu0 0.0
  %1028 = vmatpush1.msra.mxu0 0.0
  %1029 = vmatprep.subr.mxu0 0.0
  %1030 = vmatpush1.msra.mxu0 0.0
  %1031 = vmatprep.subr.mxu0 0.0
  %1032 = vmatpush1.msra.mxu0 0.0
  %1033 = vmatprep.subr.mxu0 0.0
  %1034 = vmatpush1.msra.mxu0 0.0
  %1035 = vmatprep.subr.mxu0 0.0
  %1036 = vmatpush1.msra.mxu0 0.0
  %1037 = vmatprep.subr.mxu0 0.0
  %1038 = vmatpush1.msra.mxu0 0.0
  %1039 = vmatprep.subr.mxu0 0.0
  %1040 = vmatpush1.msra.mxu0 0.0
  %1041 = vmatprep.subr.mxu0 0.0
  %1042 = vmatpush1.msra.mxu0 0.0
  %1043 = vmatprep.subr.mxu0 0.0
  %1044 = vmatpush1.msra.mxu0 0.0
  %1045 = vmatprep.subr.mxu0 0.0
  %1046 = vmatpush1.msra.mxu0 0.0
  %1047 = vmatprep.subr.mxu0 0.0
  %1048 = vmatpush1.msra.mxu0 0.0
  %1049 = vmatprep.subr.mxu0 0.0
  %1050 = vmatpush1.msra.mxu0 0.0
  %1051 = vmatprep.subr.mxu0 0.0
  %1052 = vmatpush1.msra.mxu0 0.0
  %1053 = vmatprep.subr.mxu0 0.0
  %1054 = vmatpush1.msra.mxu0 0.0
  %1055 = vmatprep.subr.mxu0 0.0
  %1056 = vmatpush1.msra.mxu0 0.0
  %1057 = vmatprep.subr.mxu0 0.0
  %1058 = vmatpush1.msra.mxu0 0.0
  %1059 = vmatprep.subr.mxu0 0.0
  %1060 = vmatpush1.msra.mxu0 0.0
  %1061 = vmatprep.subr.mxu0 0.0
  %1062 = vmatpush1.msra.mxu0 0.0
  %1063 = vmatprep.subr.mxu0 0.0
  %1064 = vmatpush1.msra.mxu0 0.0
  %1065 = vmatprep.subr.mxu0 0.0
  %1066 = vmatpush1.msra.mxu0 0.0
  %1067 = vmatprep.subr.mxu0 0.0
  %1068 = vmatpush1.msra.mxu0 0.0
  %1069 = vmatprep.subr.mxu0 0.0
  %1070 = vmatpush1.msra.mxu0 0.0
  %1071 = vmatprep.subr.mxu0 0.0
  %1072 = vmatpush1.msra.mxu0 0.0
  %1073 = vmatprep.subr.mxu0 0.0
  %1074 = vmatpush1.msra.mxu0 0.0
  %1075 = vmatprep.subr.mxu0 0.0
  %1076 = vmatpush1.msra.mxu0 0.0
  %1077 = vmatprep.mubr.f32.mxu0 0.0
  %1078 = vmatmul.mubr.f32.gmra.mrb[0].mxu0 %v115
  %v1079 = vpop.f32.mrb[0].mxu0
  %v1080 = vadd.f32 %v77, %v1079
  %v1081 = vpop.f32.mrb[0].mxu0
  %1082 = vmatprep.mubr.f32.mxu0 0.0
  %1083 = vmatmul.mubr.f32.gmra.mrb[0].mxu0 %v117
  %v1084 = vpop.f32.mrb[0].mxu0
  %v1085 = vadd.f32 %v82, %v1084
  %v1086 = vpop.f32.mrb[0].mxu0
  %1087 = vmatprep.mubr.f32.mxu0 0.0
  %1088 = vmatmul.mubr.f32.gmra.mrb[0].mxu0 %v119
  %v1089 = vpop.f32.mrb[0].mxu0
  %v1090 = vadd.f32 %v87, %v1089
  %v1091 = vpop.f32.mrb[0].mxu0
  %1092 = vmatprep.mubr.f32.mxu0 0.0
  %1093 = vmatmul.mubr.f32.gmra.mrb[0].mxu0 %v121
  %v1094 = vpop.f32.mrb[0].mxu0
  %v1095 = vadd.f32 %v92, %v1094
  %v1096 = vpop.f32.mrb[0].mxu0
  %1097 = vmatprep.mubr.f32.mxu0 0.0
  %1098 = vmatmul.mubr.f32.gmra.mrb[0].mxu0 %v123
  %v1099 = vpop.f32.mrb[0].mxu0
  %v1100 = vadd.f32 %v97, %v1099
  %v1101 = vpop.f32.mrb[0].mxu0
  %1102 = vmatprep.mubr.f32.mxu0 0.0
  %1103 = vmatmul.mubr.f32.gmra.mrb[0].mxu0 %v125
  %v1104 = vpop.f32.mrb[0].mxu0
  %v1105 = vadd.f32 %v102, %v1104
  %v1106 = vpop.f32.mrb[0].mxu0
  %1107 = vmatprep.mubr.f32.mxu0 0.0
  %1108 = vmatmul.mubr.f32.gmra.mrb[0].mxu0 %v127
  %v1109 = vpop.f32.mrb[0].mxu0
  %v1110 = vadd.f32 %v107, %v1109
  %v1111 = vpop.f32.mrb[0].mxu0
  %1112 = vmatprep.mubr.f32.mxu0 0.0
  %1113 = vmatmul.mubr.f32.gmra.mrb[0].mxu0 %v129
  %v1114 = vpop.f32.mrb[0].mxu0
  %v1115 = vadd.f32 %v112, %v1114
  %v1116 = vpop.f32.mrb[0].mxu0
  %1117 = vdwg.mxu0
  %1118 = vmatprep.subr.mxu0 0.0
  %1119 = vmatpush1.msra.mxu0 %v991
  %1120 = vmatprep.subr.mxu0 0.0
  %1121 = vmatpush1.msra.mxu0 %v992
  %1122 = vmatprep.subr.mxu0 0.0
  %1123 = vmatpush1.msra.mxu0 0.0
  %1124 = vmatprep.subr.mxu0 0.0
  %1125 = vmatpush1.msra.mxu0 0.0
  %1126 = vmatprep.subr.mxu0 0.0
  %1127 = vmatpush1.msra.mxu0 0.0
  %1128 = vmatprep.subr.mxu0 0.0
  %1129 = vmatpush1.msra.mxu0 0.0
  %1130 = vmatprep.subr.mxu0 0.0
  %1131 = vmatpush1.msra.mxu0 0.0
  %1132 = vmatprep.subr.mxu0 0.0
  %1133 = vmatpush1.msra.mxu0 0.0
  %1134 = vmatprep.subr.mxu0 0.0
  %1135 = vmatpush1.msra.mxu0 0.0
  %1136 = vmatprep.subr.mxu0 0.0
  %1137 = vmatpush1.msra.mxu0 0.0
  %1138 = vmatprep.subr.mxu0 0.0
  %1139 = vmatpush1.msra.mxu0 0.0
  %1140 = vmatprep.subr.mxu0 0.0
  %1141 = vmatpush1.msra.mxu0 0.0
  %1142 = vmatprep.subr.mxu0 0.0
  %1143 = vmatpush1.msra.mxu0 0.0
  %1144 = vmatprep.subr.mxu0 0.0
  %1145 = vmatpush1.msra.mxu0 0.0
  %1146 = vmatprep.subr.mxu0 0.0
  %1147 = vmatpush1.msra.mxu0 0.0
  %1148 = vmatprep.subr.mxu0 0.0
  %1149 = vmatpush1.msra.mxu0 0.0
  %1150 = vmatprep.subr.mxu0 0.0
  %1151 = vmatpush1.msra.mxu0 0.0
  %1152 = vmatprep.subr.mxu0 0.0
  %1153 = vmatpush1.msra.mxu0 0.0
  %1154 = vmatprep.subr.mxu0 0.0
  %1155 = vmatpush1.msra.mxu0 0.0
  %1156 = vmatprep.subr.mxu0 0.0
  %1157 = vmatpush1.msra.mxu0 0.0
  %1158 = vmatprep.subr.mxu0 0.0
  %1159 = vmatpush1.msra.mxu0 0.0
  %1160 = vmatprep.subr.mxu0 0.0
  %1161 = vmatpush1.msra.mxu0 0.0
  %1162 = vmatprep.subr.mxu0 0.0
  %1163 = vmatpush1.msra.mxu0 0.0
  %1164 = vmatprep.subr.mxu0 0.0
  %1165 = vmatpush1.msra.mxu0 0.0
  %1166 = vmatprep.subr.mxu0 0.0
  %1167 = vmatpush1.msra.mxu0 0.0
  %1168 = vmatprep.subr.mxu0 0.0
  %1169 = vmatpush1.msra.mxu0 0.0
  %1170 = vmatprep.subr.mxu0 0.0
  %1171 = vmatpush1.msra.mxu0 0.0
  %1172 = vmatprep.subr.mxu0 0.0
  %1173 = vmatpush1.msra.mxu0 0.0
  %1174 = vmatprep.subr.mxu0 0.0
  %1175 = vmatpush1.msra.mxu0 0.0
  %1176 = vmatprep.subr.mxu0 0.0
  %1177 = vmatpush1.msra.mxu0 0.0
  %1178 = vmatprep.subr.mxu0 0.0
  %1179 = vmatpush1.msra.mxu0 0.0
  %1180 = vmatprep.subr.mxu0 0.0
  %1181 = vmatpush1.msra.mxu0 0.0
  %1182 = vmatprep.mubr.f32.mxu0 0.0
  %1183 = vmatmul.mubr.f32.gmra.mrb[0].mxu0 %v237
  %v1184 = vpop.f32.mrb[0].mxu0
  %v1185 = vadd.f32 0.0, %v1184
  %v1186 = vpop.f32.mrb[0].mxu0
  %1187 = vmatprep.mubr.f32.mxu0 0.0
  %1188 = vmatmul.mubr.f32.gmra.mrb[0].mxu0 %v240
  %v1189 = vpop.f32.mrb[0].mxu0
  %v1190 = vadd.f32 0.0, %v1189
  %v1191 = vpop.f32.mrb[0].mxu0
  %1192 = vmatprep.mubr.f32.mxu0 0.0
  %1193 = vmatmul.mubr.f32.gmra.mrb[0].mxu0 %v243
  %v1194 = vpop.f32.mrb[0].mxu0
  %v1195 = vadd.f32 0.0, %v1194
  %v1196 = vpop.f32.mrb[0].mxu0
  %1197 = vmatprep.mubr.f32.mxu0 0.0
  %1198 = vmatmul.mubr.f32.gmra.mrb[0].mxu0 %v246
  %v1199 = vpop.f32.mrb[0].mxu0
  %v1200 = vadd.f32 0.0, %v1199
  %v1201 = vpop.f32.mrb[0].mxu0
  %1202 = vmatprep.mubr.f32.mxu0 0.0
  %1203 = vmatmul.mubr.f32.gmra.mrb[0].mxu0 %v249
  %v1204 = vpop.f32.mrb[0].mxu0
  %v1205 = vadd.f32 0.0, %v1204
  %v1206 = vpop.f32.mrb[0].mxu0
  %1207 = vmatprep.mubr.f32.mxu0 0.0
  %1208 = vmatmul.mubr.f32.gmra.mrb[0].mxu0 %v252
  %v1209 = vpop.f32.mrb[0].mxu0
  %v1210 = vadd.f32 0.0, %v1209
  %v1211 = vpop.f32.mrb[0].mxu0
  %1212 = vmatprep.mubr.f32.mxu0 0.0
  %1213 = vmatmul.mubr.f32.gmra.mrb[0].mxu0 %v255
  %v1214 = vpop.f32.mrb[0].mxu0
  %v1215 = vadd.f32 0.0, %v1214
  %v1216 = vpop.f32.mrb[0].mxu0
  %1217 = vmatprep.mubr.f32.mxu0 0.0
  %1218 = vmatmul.mubr.f32.gmra.mrb[0].mxu0 %v258
  %v1219 = vpop.f32.mrb[0].mxu0
  %v1220 = vadd.f32 0.0, %v1219
  %v1221 = vpop.f32.mrb[0].mxu0
  %1222 = vdwg.mxu0
  %v1223 = vadd.f32 %v1080, %v1185
  %v1224 = vadd.f32 %v1085, %v1190
  %v1225 = vadd.f32 %v1090, %v1195
  %v1226 = vadd.f32 %v1095, %v1200
  %v1227 = vadd.f32 %v1100, %v1205
  %v1228 = vadd.f32 %v1105, %v1210
  %v1229 = vadd.f32 %v1110, %v1215
  %v1230 = vadd.f32 %v1115, %v1220
  %v1231 = vxor.u32 %v1223, 2147483648
  %v1232 = vxor.u32 %v1224, 2147483648
  %v1233 = vmul.f32 %v1231, 1.442695
  %v1234 = vpow.pop %v1233
  %v1235 = vmul.f32 %v1232, 1.442695
  %v1236 = vpow.pop %v1235
  %v1237 = vadd.f32 %v1234, 1.0
  %v1238 = vadd.f32 %v1236, 1.0
  %v1239 = vrcp.pop %v1237
  %v1240 = vmul.f32 1.0, %v1239
  %v1241 = vrcp.pop %v1238
  %v1242 = vmul.f32 1.0, %v1241
  %v1243 = vxor.u32 %v1225, 2147483648
  %v1244 = vxor.u32 %v1226, 2147483648
  %v1245 = vmul.f32 %v1243, 1.442695
  %v1246 = vpow.pop %v1245
  %v1247 = vmul.f32 %v1244, 1.442695
  %v1248 = vpow.pop %v1247
  %v1249 = vadd.f32 %v1246, 1.0
  %v1250 = vadd.f32 %v1248, 1.0
  %v1251 = vrcp.pop %v1249
  %v1252 = vmul.f32 1.0, %v1251
  %v1253 = vrcp.pop %v1250
  %v1254 = vmul.f32 1.0, %v1253
  %v1255 = vtanh.pop %v1227
  %v1256 = vtanh.pop %v1228
  %v1257 = vxor.u32 %v1229, 2147483648
  %v1258 = vxor.u32 %v1230, 2147483648
  %v1259 = vmul.f32 %v1257, 1.442695
  %v1260 = vpow.pop %v1259
  %v1261 = vmul.f32 %v1258, 1.442695
  %v1262 = vpow.pop %v1261
  %v1263 = vadd.f32 %v1260, 1.0
  %v1264 = vadd.f32 %v1262, 1.0
  %v1265 = vrcp.pop %v1263
  %v1266 = vmul.f32 1.0, %v1265
  %v1267 = vrcp.pop %v1264
  %v1268 = vmul.f32 1.0, %v1267
  %v1269 = vmul.f32 %v1252, %v987
  %v1270 = vmul.f32 %v1254, %v988
  %v1271 = vmul.f32 %v1240, %v1255
  %v1272 = vmul.f32 %v1242, %v1256
  %v1273 = vadd.f32 %v1269, %v1271
  %v1274 = vadd.f32 %v1270, %v1272
  %v1275 = vtanh.pop %v1273
  %v1276 = vtanh.pop %v1274
  %v1277 = vmul.f32 %v1266, %v1275
  %v1278 = vmul.f32 %v1268, %v1276
  %s1279 = scalar_lea.vmem %s0, 8
  %v1280 = vld [vmem:[%s1279] sm:$0x3]
  %v1281 = vlaneseq
  %v1282 = vshrl.u32 %v1281, 7
  %v1283 = vsub.s32 0, %v1282
  %v1284 = vrot.slane %v1280, %v1283
  %v1285 = vmul.f32 %v33, %v1284
  %v1286 = vmul.f32 %v38, %v1284
  %v1287 = vlaneseq
  %v1288 = vshrl.u32 %v1287, 7
  %v1289 = vsub.s32 1, %v1288
  %v1290 = vrot.slane %v1280, %v1289
  %v1291 = vmul.f32 %v48, %v1290
  %v1292 = vmul.f32 %v52, %v1290
  %v1293 = vadd.f32 %v1285, %v1291
  %v1294 = vadd.f32 %v1286, %v1292
  %v1295 = vadd.f32 %v1293, %v64
  %v1296 = vadd.f32 %v1294, %v68
  %v1297 = vmax.f32 %v1295, 0.0
  %v1298 = vmax.f32 %v1296, 0.0
  %1299 = vmatprep.subr.mxu0 0.0
  %1300 = vmatpush1.msra.mxu0 %v1297
  %1301 = vmatprep.subr.mxu0 0.0
  %1302 = vmatpush1.msra.mxu0 %v1298
  %1303 = vmatprep.subr.mxu0 0.0
  %1304 = vmatpush1.msra.mxu0 0.0
  %1305 = vmatprep.subr.mxu0 0.0
  %1306 = vmatpush1.msra.mxu0 0.0
  %1307 = vmatprep.subr.mxu0 0.0
  %1308 = vmatpush1.msra.mxu0 0.0
  %1309 = vmatprep.subr.mxu0 0.0
  %1310 = vmatpush1.msra.mxu0 0.0
  %1311 = vmatprep.subr.mxu0 0.0
  %1312 = vmatpush1.msra.mxu0 0.0
  %1313 = vmatprep.subr.mxu0 0.0
  %1314 = vmatpush1.msra.mxu0 0.0
  %1315 = vmatprep.subr.mxu0 0.0
  %1316 = vmatpush1.msra.mxu0 0.0
  %1317 = vmatprep.subr.mxu0 0.0
  %1318 = vmatpush1.msra.mxu0 0.0
  %1319 = vmatprep.subr.mxu0 0.0
  %1320 = vmatpush1.msra.mxu0 0.0
  %1321 = vmatprep.subr.mxu0 0.0
  %1322 = vmatpush1.msra.mxu0 0.0
  %1323 = vmatprep.subr.mxu0 0.0
  %1324 = vmatpush1.msra.mxu0 0.0
  %1325 = vmatprep.subr.mxu0 0.0
  %1326 = vmatpush1.msra.mxu0 0.0
  %1327 = vmatprep.subr.mxu0 0.0
  %1328 = vmatpush1.msra.mxu0 0.0
  %1329 = vmatprep.subr.mxu0 0.0
  %1330 = vmatpush1.msra.mxu0 0.0
  %1331 = vmatprep.subr.mxu0 0.0
  %1332 = vmatpush1.msra.mxu0 0.0
  %1333 = vmatprep.subr.mxu0 0.0
  %1334 = vmatpush1.msra.mxu0 0.0
  %1335 = vmatprep.subr.mxu0 0.0
  %1336 = vmatpush1.msra.mxu0 0.0
  %1337 = vmatprep.subr.mxu0 0.0
  %1338 = vmatpush1.msra.mxu0 0.0
  %1339 = vmatprep.subr.mxu0 0.0
  %1340 = vmatpush1.msra.mxu0 0.0
  %1341 = vmatprep.subr.mxu0 0.0
  %1342 = vmatpush1.msra.mxu0 0.0
  %1343 = vmatprep.subr.mxu0 0.0
  %1344 = vmatpush1.msra.mxu0 0.0
  %1345 = vmatprep.subr.mxu0 0.0
  %1346 = vmatpush1.msra.mxu0 0.0
  %1347 = vmatprep.subr.mxu0 0.0
  %1348 = vmatpush1.msra.mxu0 0.0
  %1349 = vmatprep.subr.mxu0 0.0
  %1350 = vmatpush1.msra.mxu0 0.0
  %1351 = vmatprep.subr.mxu0 0.0
  %1352 = vmatpush1.msra.mxu0 0.0
  %1353 = vmatprep.subr.mxu0 0.0
  %1354 = vmatpush1.msra.mxu0 0.0
  %1355 = vmatprep.subr.mxu0 0.0
  %1356 = vmatpush1.msra.mxu0 0.0
  %1357 = vmatprep.subr.mxu0 0.0
  %1358 = vmatpush1.msra.mxu0 0.0
  %1359 = vmatprep.subr.mxu0 0.0
  %1360 = vmatpush1.msra.mxu0 0.0
  %1361 = vmatprep.subr.mxu0 0.0
  %1362 = vmatpush1.msra.mxu0 0.0
  %1363 = vmatprep.mubr.f32.mxu0 0.0
  %1364 = vmatmul.mubr.f32.gmra.mrb[0].mxu0 %v115
  %v1365 = vpop.f32.mrb[0].mxu0
  %v1366 = vadd.f32 %v77, %v1365
  %v1367 = vpop.f32.mrb[0].mxu0
  %1368 = vmatprep.mubr.f32.mxu0 0.0
  %1369 = vmatmul.mubr.f32.gmra.mrb[0].mxu0 %v117
  %v1370 = vpop.f32.mrb[0].mxu0
  %v1371 = vadd.f32 %v82, %v1370
  %v1372 = vpop.f32.mrb[0].mxu0
  %1373 = vmatprep.mubr.f32.mxu0 0.0
  %1374 = vmatmul.mubr.f32.gmra.mrb[0].mxu0 %v119
  %v1375 = vpop.f32.mrb[0].mxu0
  %v1376 = vadd.f32 %v87, %v1375
  %v1377 = vpop.f32.mrb[0].mxu0
  %1378 = vmatprep.mubr.f32.mxu0 0.0
  %1379 = vmatmul.mubr.f32.gmra.mrb[0].mxu0 %v121
  %v1380 = vpop.f32.mrb[0].mxu0
  %v1381 = vadd.f32 %v92, %v1380
  %v1382 = vpop.f32.mrb[0].mxu0
  %1383 = vmatprep.mubr.f32.mxu0 0.0
  %1384 = vmatmul.mubr.f32.gmra.mrb[0].mxu0 %v123
  %v1385 = vpop.f32.mrb[0].mxu0
  %v1386 = vadd.f32 %v97, %v1385
  %v1387 = vpop.f32.mrb[0].mxu0
  %1388 = vmatprep.mubr.f32.mxu0 0.0
  %1389 = vmatmul.mubr.f32.gmra.mrb[0].mxu0 %v125
  %v1390 = vpop.f32.mrb[0].mxu0
  %v1391 = vadd.f32 %v102, %v1390
  %v1392 = vpop.f32.mrb[0].mxu0
  %1393 = vmatprep.mubr.f32.mxu0 0.0
  %1394 = vmatmul.mubr.f32.gmra.mrb[0].mxu0 %v127
  %v1395 = vpop.f32.mrb[0].mxu0
  %v1396 = vadd.f32 %v107, %v1395
  %v1397 = vpop.f32.mrb[0].mxu0
  %1398 = vmatprep.mubr.f32.mxu0 0.0
  %1399 = vmatmul.mubr.f32.gmra.mrb[0].mxu0 %v129
  %v1400 = vpop.f32.mrb[0].mxu0
  %v1401 = vadd.f32 %v112, %v1400
  %v1402 = vpop.f32.mrb[0].mxu0
  %1403 = vdwg.mxu0
  %1404 = vmatprep.subr.mxu0 0.0
  %1405 = vmatpush1.msra.mxu0 %v1277
  %1406 = vmatprep.subr.mxu0 0.0
  %1407 = vmatpush1.msra.mxu0 %v1278
  %1408 = vmatprep.subr.mxu0 0.0
  %1409 = vmatpush1.msra.mxu0 0.0
  %1410 = vmatprep.subr.mxu0 0.0
  %1411 = vmatpush1.msra.mxu0 0.0
  %1412 = vmatprep.subr.mxu0 0.0
  %1413 = vmatpush1.msra.mxu0 0.0
  %1414 = vmatprep.subr.mxu0 0.0
  %1415 = vmatpush1.msra.mxu0 0.0
  %1416 = vmatprep.subr.mxu0 0.0
  %1417 = vmatpush1.msra.mxu0 0.0
  %1418 = vmatprep.subr.mxu0 0.0
  %1419 = vmatpush1.msra.mxu0 0.0
  %1420 = vmatprep.subr.mxu0 0.0
  %1421 = vmatpush1.msra.mxu0 0.0
  %1422 = vmatprep.subr.mxu0 0.0
  %1423 = vmatpush1.msra.mxu0 0.0
  %1424 = vmatprep.subr.mxu0 0.0
  %1425 = vmatpush1.msra.mxu0 0.0
  %1426 = vmatprep.subr.mxu0 0.0
  %1427 = vmatpush1.msra.mxu0 0.0
  %1428 = vmatprep.subr.mxu0 0.0
  %1429 = vmatpush1.msra.mxu0 0.0
  %1430 = vmatprep.subr.mxu0 0.0
  %1431 = vmatpush1.msra.mxu0 0.0
  %1432 = vmatprep.subr.mxu0 0.0
  %1433 = vmatpush1.msra.mxu0 0.0
  %1434 = vmatprep.subr.mxu0 0.0
  %1435 = vmatpush1.msra.mxu0 0.0
  %1436 = vmatprep.subr.mxu0 0.0
  %1437 = vmatpush1.msra.mxu0 0.0
  %1438 = vmatprep.subr.mxu0 0.0
  %1439 = vmatpush1.msra.mxu0 0.0
  %1440 = vmatprep.subr.mxu0 0.0
  %1441 = vmatpush1.msra.mxu0 0.0
  %1442 = vmatprep.subr.mxu0 0.0
  %1443 = vmatpush1.msra.mxu0 0.0
  %1444 = vmatprep.subr.mxu0 0.0
  %1445 = vmatpush1.msra.mxu0 0.0
  %1446 = vmatprep.subr.mxu0 0.0
  %1447 = vmatpush1.msra.mxu0 0.0
  %1448 = vmatprep.subr.mxu0 0.0
  %1449 = vmatpush1.msra.mxu0 0.0
  %1450 = vmatprep.subr.mxu0 0.0
  %1451 = vmatpush1.msra.mxu0 0.0
  %1452 = vmatprep.subr.mxu0 0.0
  %1453 = vmatpush1.msra.mxu0 0.0
  %1454 = vmatprep.subr.mxu0 0.0
  %1455 = vmatpush1.msra.mxu0 0.0
  %1456 = vmatprep.subr.mxu0 0.0
  %1457 = vmatpush1.msra.mxu0 0.0
  %1458 = vmatprep.subr.mxu0 0.0
  %1459 = vmatpush1.msra.mxu0 0.0
  %1460 = vmatprep.subr.mxu0 0.0
  %1461 = vmatpush1.msra.mxu0 0.0
  %1462 = vmatprep.subr.mxu0 0.0
  %1463 = vmatpush1.msra.mxu0 0.0
  %1464 = vmatprep.subr.mxu0 0.0
  %1465 = vmatpush1.msra.mxu0 0.0
  %1466 = vmatprep.subr.mxu0 0.0
  %1467 = vmatpush1.msra.mxu0 0.0
  %1468 = vmatprep.mubr.f32.mxu0 0.0
  %1469 = vmatmul.mubr.f32.gmra.mrb[0].mxu0 %v237
  %v1470 = vpop.f32.mrb[0].mxu0
  %v1471 = vadd.f32 0.0, %v1470
  %v1472 = vpop.f32.mrb[0].mxu0
  %1473 = vmatprep.mubr.f32.mxu0 0.0
  %1474 = vmatmul.mubr.f32.gmra.mrb[0].mxu0 %v240
  %v1475 = vpop.f32.mrb[0].mxu0
  %v1476 = vadd.f32 0.0, %v1475
  %v1477 = vpop.f32.mrb[0].mxu0
  %1478 = vmatprep.mubr.f32.mxu0 0.0
  %1479 = vmatmul.mubr.f32.gmra.mrb[0].mxu0 %v243
  %v1480 = vpop.f32.mrb[0].mxu0
  %v1481 = vadd.f32 0.0, %v1480
  %v1482 = vpop.f32.mrb[0].mxu0
  %1483 = vmatprep.mubr.f32.mxu0 0.0
  %1484 = vmatmul.mubr.f32.gmra.mrb[0].mxu0 %v246
  %v1485 = vpop.f32.mrb[0].mxu0
  %v1486 = vadd.f32 0.0, %v1485
  %v1487 = vpop.f32.mrb[0].mxu0
  %1488 = vmatprep.mubr.f32.mxu0 0.0
  %1489 = vmatmul.mubr.f32.gmra.mrb[0].mxu0 %v249
  %v1490 = vpop.f32.mrb[0].mxu0
  %v1491 = vadd.f32 0.0, %v1490
  %v1492 = vpop.f32.mrb[0].mxu0
  %1493 = vmatprep.mubr.f32.mxu0 0.0
  %1494 = vmatmul.mubr.f32.gmra.mrb[0].mxu0 %v252
  %v1495 = vpop.f32.mrb[0].mxu0
  %v1496 = vadd.f32 0.0, %v1495
  %v1497 = vpop.f32.mrb[0].mxu0
  %1498 = vmatprep.mubr.f32.mxu0 0.0
  %1499 = vmatmul.mubr.f32.gmra.mrb[0].mxu0 %v255
  %v1500 = vpop.f32.mrb[0].mxu0
  %v1501 = vadd.f32 0.0, %v1500
  %v1502 = vpop.f32.mrb[0].mxu0
  %1503 = vmatprep.mubr.f32.mxu0 0.0
  %1504 = vmatmul.mubr.f32.gmra.mrb[0].mxu0 %v258
  %v1505 = vpop.f32.mrb[0].mxu0
  %v1506 = vadd.f32 0.0, %v1505
  %v1507 = vpop.f32.mrb[0].mxu0
  %1508 = vdwg.mxu0
  %v1509 = vadd.f32 %v1366, %v1471
  %v1510 = vadd.f32 %v1371, %v1476
  %v1511 = vadd.f32 %v1376, %v1481
  %v1512 = vadd.f32 %v1381, %v1486
  %v1513 = vadd.f32 %v1386, %v1491
  %v1514 = vadd.f32 %v1391, %v1496
  %v1515 = vadd.f32 %v1396, %v1501
  %v1516 = vadd.f32 %v1401, %v1506
  %v1517 = vxor.u32 %v1509, 2147483648
  %v1518 = vxor.u32 %v1510, 2147483648
  %v1519 = vmul.f32 %v1517, 1.442695
  %v1520 = vpow.pop %v1519
  %v1521 = vmul.f32 %v1518, 1.442695
  %v1522 = vpow.pop %v1521
  %v1523 = vadd.f32 %v1520, 1.0
  %v1524 = vadd.f32 %v1522, 1.0
  %v1525 = vrcp.pop %v1523
  %v1526 = vmul.f32 1.0, %v1525
  %v1527 = vrcp.pop %v1524
  %v1528 = vmul.f32 1.0, %v1527
  %v1529 = vxor.u32 %v1511, 2147483648
  %v1530 = vxor.u32 %v1512, 2147483648
  %v1531 = vmul.f32 %v1529, 1.442695
  %v1532 = vpow.pop %v1531
  %v1533 = vmul.f32 %v1530, 1.442695
  %v1534 = vpow.pop %v1533
  %v1535 = vadd.f32 %v1532, 1.0
  %v1536 = vadd.f32 %v1534, 1.0
  %v1537 = vrcp.pop %v1535
  %v1538 = vmul.f32 1.0, %v1537
  %v1539 = vrcp.pop %v1536
  %v1540 = vmul.f32 1.0, %v1539
  %v1541 = vtanh.pop %v1513
  %v1542 = vtanh.pop %v1514
  %v1543 = vxor.u32 %v1515, 2147483648
  %v1544 = vxor.u32 %v1516, 2147483648
  %v1545 = vmul.f32 %v1543, 1.442695
  %v1546 = vpow.pop %v1545
  %v1547 = vmul.f32 %v1544, 1.442695
  %v1548 = vpow.pop %v1547
  %v1549 = vadd.f32 %v1546, 1.0
  %v1550 = vadd.f32 %v1548, 1.0
  %v1551 = vrcp.pop %v1549
  %v1552 = vmul.f32 1.0, %v1551
  %v1553 = vrcp.pop %v1550
  %v1554 = vmul.f32 1.0, %v1553
  %v1555 = vmul.f32 %v1538, %v1273
  %v1556 = vmul.f32 %v1540, %v1274
  %v1557 = vmul.f32 %v1526, %v1541
  %v1558 = vmul.f32 %v1528, %v1542
  %v1559 = vadd.f32 %v1555, %v1557
  %v1560 = vadd.f32 %v1556, %v1558
  %v1561 = vtanh.pop %v1559
  %v1562 = vtanh.pop %v1560
  %v1563 = vmul.f32 %v1552, %v1561
  %v1564 = vmul.f32 %v1554, %v1562
  %s1565 = scalar_lea.vmem %s0, 10
  %v1566 = vld [vmem:[%s1565] sm:$0x3]
  %v1567 = vlaneseq
  %v1568 = vshrl.u32 %v1567, 7
  %v1569 = vsub.s32 0, %v1568
  %v1570 = vrot.slane %v1566, %v1569
  %v1571 = vmul.f32 %v33, %v1570
  %v1572 = vmul.f32 %v38, %v1570
  %v1573 = vlaneseq
  %v1574 = vshrl.u32 %v1573, 7
  %v1575 = vsub.s32 1, %v1574
  %v1576 = vrot.slane %v1566, %v1575
  %v1577 = vmul.f32 %v48, %v1576
  %v1578 = vmul.f32 %v52, %v1576
  %v1579 = vadd.f32 %v1571, %v1577
  %v1580 = vadd.f32 %v1572, %v1578
  %v1581 = vadd.f32 %v1579, %v64
  %v1582 = vadd.f32 %v1580, %v68
  %v1583 = vmax.f32 %v1581, 0.0
  %v1584 = vmax.f32 %v1582, 0.0
  %1585 = vmatprep.subr.mxu0 0.0
  %1586 = vmatpush1.msra.mxu0 %v1583
  %1587 = vmatprep.subr.mxu0 0.0
  %1588 = vmatpush1.msra.mxu0 %v1584
  %1589 = vmatprep.subr.mxu0 0.0
  %1590 = vmatpush1.msra.mxu0 0.0
  %1591 = vmatprep.subr.mxu0 0.0
  %1592 = vmatpush1.msra.mxu0 0.0
  %1593 = vmatprep.subr.mxu0 0.0
  %1594 = vmatpush1.msra.mxu0 0.0
  %1595 = vmatprep.subr.mxu0 0.0
  %1596 = vmatpush1.msra.mxu0 0.0
  %1597 = vmatprep.subr.mxu0 0.0
  %1598 = vmatpush1.msra.mxu0 0.0
  %1599 = vmatprep.subr.mxu0 0.0
  %1600 = vmatpush1.msra.mxu0 0.0
  %1601 = vmatprep.subr.mxu0 0.0
  %1602 = vmatpush1.msra.mxu0 0.0
  %1603 = vmatprep.subr.mxu0 0.0
  %1604 = vmatpush1.msra.mxu0 0.0
  %1605 = vmatprep.subr.mxu0 0.0
  %1606 = vmatpush1.msra.mxu0 0.0
  %1607 = vmatprep.subr.mxu0 0.0
  %1608 = vmatpush1.msra.mxu0 0.0
  %1609 = vmatprep.subr.mxu0 0.0
  %1610 = vmatpush1.msra.mxu0 0.0
  %1611 = vmatprep.subr.mxu0 0.0
  %1612 = vmatpush1.msra.mxu0 0.0
  %1613 = vmatprep.subr.mxu0 0.0
  %1614 = vmatpush1.msra.mxu0 0.0
  %1615 = vmatprep.subr.mxu0 0.0
  %1616 = vmatpush1.msra.mxu0 0.0
  %1617 = vmatprep.subr.mxu0 0.0
  %1618 = vmatpush1.msra.mxu0 0.0
  %1619 = vmatprep.subr.mxu0 0.0
  %1620 = vmatpush1.msra.mxu0 0.0
  %1621 = vmatprep.subr.mxu0 0.0
  %1622 = vmatpush1.msra.mxu0 0.0
  %1623 = vmatprep.subr.mxu0 0.0
  %1624 = vmatpush1.msra.mxu0 0.0
  %1625 = vmatprep.subr.mxu0 0.0
  %1626 = vmatpush1.msra.mxu0 0.0
  %1627 = vmatprep.subr.mxu0 0.0
  %1628 = vmatpush1.msra.mxu0 0.0
  %1629 = vmatprep.subr.mxu0 0.0
  %1630 = vmatpush1.msra.mxu0 0.0
  %1631 = vmatprep.subr.mxu0 0.0
  %1632 = vmatpush1.msra.mxu0 0.0
  %1633 = vmatprep.subr.mxu0 0.0
  %1634 = vmatpush1.msra.mxu0 0.0
  %1635 = vmatprep.subr.mxu0 0.0
  %1636 = vmatpush1.msra.mxu0 0.0
  %1637 = vmatprep.subr.mxu0 0.0
  %1638 = vmatpush1.msra.mxu0 0.0
  %1639 = vmatprep.subr.mxu0 0.0
  %1640 = vmatpush1.msra.mxu0 0.0
  %1641 = vmatprep.subr.mxu0 0.0
  %1642 = vmatpush1.msra.mxu0 0.0
  %1643 = vmatprep.subr.mxu0 0.0
  %1644 = vmatpush1.msra.mxu0 0.0
  %1645 = vmatprep.subr.mxu0 0.0
  %1646 = vmatpush1.msra.mxu0 0.0
  %1647 = vmatprep.subr.mxu0 0.0
  %1648 = vmatpush1.msra.mxu0 0.0
  %1649 = vmatprep.mubr.f32.mxu0 0.0
  %1650 = vmatmul.mubr.f32.gmra.mrb[0].mxu0 %v115
  %v1651 = vpop.f32.mrb[0].mxu0
  %v1652 = vadd.f32 %v77, %v1651
  %v1653 = vpop.f32.mrb[0].mxu0
  %1654 = vmatprep.mubr.f32.mxu0 0.0
  %1655 = vmatmul.mubr.f32.gmra.mrb[0].mxu0 %v117
  %v1656 = vpop.f32.mrb[0].mxu0
  %v1657 = vadd.f32 %v82, %v1656
  %v1658 = vpop.f32.mrb[0].mxu0
  %1659 = vmatprep.mubr.f32.mxu0 0.0
  %1660 = vmatmul.mubr.f32.gmra.mrb[0].mxu0 %v119
  %v1661 = vpop.f32.mrb[0].mxu0
  %v1662 = vadd.f32 %v87, %v1661
  %v1663 = vpop.f32.mrb[0].mxu0
  %1664 = vmatprep.mubr.f32.mxu0 0.0
  %1665 = vmatmul.mubr.f32.gmra.mrb[0].mxu0 %v121
  %v1666 = vpop.f32.mrb[0].mxu0
  %v1667 = vadd.f32 %v92, %v1666
  %v1668 = vpop.f32.mrb[0].mxu0
  %1669 = vmatprep.mubr.f32.mxu0 0.0
  %1670 = vmatmul.mubr.f32.gmra.mrb[0].mxu0 %v123
  %v1671 = vpop.f32.mrb[0].mxu0
  %v1672 = vadd.f32 %v97, %v1671
  %v1673 = vpop.f32.mrb[0].mxu0
  %1674 = vmatprep.mubr.f32.mxu0 0.0
  %1675 = vmatmul.mubr.f32.gmra.mrb[0].mxu0 %v125
  %v1676 = vpop.f32.mrb[0].mxu0
  %v1677 = vadd.f32 %v102, %v1676
  %v1678 = vpop.f32.mrb[0].mxu0
  %1679 = vmatprep.mubr.f32.mxu0 0.0
  %1680 = vmatmul.mubr.f32.gmra.mrb[0].mxu0 %v127
  %v1681 = vpop.f32.mrb[0].mxu0
  %v1682 = vadd.f32 %v107, %v1681
  %v1683 = vpop.f32.mrb[0].mxu0
  %1684 = vmatprep.mubr.f32.mxu0 0.0
  %1685 = vmatmul.mubr.f32.gmra.mrb[0].mxu0 %v129
  %v1686 = vpop.f32.mrb[0].mxu0
  %v1687 = vadd.f32 %v112, %v1686
  %v1688 = vpop.f32.mrb[0].mxu0
  %1689 = vdwg.mxu0
  %1690 = vmatprep.subr.mxu0 0.0
  %1691 = vmatpush1.msra.mxu0 %v1563
  %1692 = vmatprep.subr.mxu0 0.0
  %1693 = vmatpush1.msra.mxu0 %v1564
  %1694 = vmatprep.subr.mxu0 0.0
  %1695 = vmatpush1.msra.mxu0 0.0
  %1696 = vmatprep.subr.mxu0 0.0
  %1697 = vmatpush1.msra.mxu0 0.0
  %1698 = vmatprep.subr.mxu0 0.0
  %1699 = vmatpush1.msra.mxu0 0.0
  %1700 = vmatprep.subr.mxu0 0.0
  %1701 = vmatpush1.msra.mxu0 0.0
  %1702 = vmatprep.subr.mxu0 0.0
  %1703 = vmatpush1.msra.mxu0 0.0
  %1704 = vmatprep.subr.mxu0 0.0
  %1705 = vmatpush1.msra.mxu0 0.0
  %1706 = vmatprep.subr.mxu0 0.0
  %1707 = vmatpush1.msra.mxu0 0.0
  %1708 = vmatprep.subr.mxu0 0.0
  %1709 = vmatpush1.msra.mxu0 0.0
  %1710 = vmatprep.subr.mxu0 0.0
  %1711 = vmatpush1.msra.mxu0 0.0
  %1712 = vmatprep.subr.mxu0 0.0
  %1713 = vmatpush1.msra.mxu0 0.0
  %1714 = vmatprep.subr.mxu0 0.0
  %1715 = vmatpush1.msra.mxu0 0.0
  %1716 = vmatprep.subr.mxu0 0.0
  %1717 = vmatpush1.msra.mxu0 0.0
  %1718 = vmatprep.subr.mxu0 0.0
  %1719 = vmatpush1.msra.mxu0 0.0
  %1720 = vmatprep.subr.mxu0 0.0
  %1721 = vmatpush1.msra.mxu0 0.0
  %1722 = vmatprep.subr.mxu0 0.0
  %1723 = vmatpush1.msra.mxu0 0.0
  %1724 = vmatprep.subr.mxu0 0.0
  %1725 = vmatpush1.msra.mxu0 0.0
  %1726 = vmatprep.subr.mxu0 0.0
  %1727 = vmatpush1.msra.mxu0 0.0
  %1728 = vmatprep.subr.mxu0 0.0
  %1729 = vmatpush1.msra.mxu0 0.0
  %1730 = vmatprep.subr.mxu0 0.0
  %1731 = vmatpush1.msra.mxu0 0.0
  %1732 = vmatprep.subr.mxu0 0.0
  %1733 = vmatpush1.msra.mxu0 0.0
  %1734 = vmatprep.subr.mxu0 0.0
  %1735 = vmatpush1.msra.mxu0 0.0
  %1736 = vmatprep.subr.mxu0 0.0
  %1737 = vmatpush1.msra.mxu0 0.0
  %1738 = vmatprep.subr.mxu0 0.0
  %1739 = vmatpush1.msra.mxu0 0.0
  %1740 = vmatprep.subr.mxu0 0.0
  %1741 = vmatpush1.msra.mxu0 0.0
  %1742 = vmatprep.subr.mxu0 0.0
  %1743 = vmatpush1.msra.mxu0 0.0
  %1744 = vmatprep.subr.mxu0 0.0
  %1745 = vmatpush1.msra.mxu0 0.0
  %1746 = vmatprep.subr.mxu0 0.0
  %1747 = vmatpush1.msra.mxu0 0.0
  %1748 = vmatprep.subr.mxu0 0.0
  %1749 = vmatpush1.msra.mxu0 0.0
  %1750 = vmatprep.subr.mxu0 0.0
  %1751 = vmatpush1.msra.mxu0 0.0
  %1752 = vmatprep.subr.mxu0 0.0
  %1753 = vmatpush1.msra.mxu0 0.0
  %1754 = vmatprep.mubr.f32.mxu0 0.0
  %1755 = vmatmul.mubr.f32.gmra.mrb[0].mxu0 %v237
  %v1756 = vpop.f32.mrb[0].mxu0
  %v1757 = vadd.f32 0.0, %v1756
  %v1758 = vpop.f32.mrb[0].mxu0
  %1759 = vmatprep.mubr.f32.mxu0 0.0
  %1760 = vmatmul.mubr.f32.gmra.mrb[0].mxu0 %v240
  %v1761 = vpop.f32.mrb[0].mxu0
  %v1762 = vadd.f32 0.0, %v1761
  %v1763 = vpop.f32.mrb[0].mxu0
  %1764 = vmatprep.mubr.f32.mxu0 0.0
  %1765 = vmatmul.mubr.f32.gmra.mrb[0].mxu0 %v243
  %v1766 = vpop.f32.mrb[0].mxu0
  %v1767 = vadd.f32 0.0, %v1766
  %v1768 = vpop.f32.mrb[0].mxu0
  %1769 = vmatprep.mubr.f32.mxu0 0.0
  %1770 = vmatmul.mubr.f32.gmra.mrb[0].mxu0 %v246
  %v1771 = vpop.f32.mrb[0].mxu0
  %v1772 = vadd.f32 0.0, %v1771
  %v1773 = vpop.f32.mrb[0].mxu0
  %1774 = vmatprep.mubr.f32.mxu0 0.0
  %1775 = vmatmul.mubr.f32.gmra.mrb[0].mxu0 %v249
  %v1776 = vpop.f32.mrb[0].mxu0
  %v1777 = vadd.f32 0.0, %v1776
  %v1778 = vpop.f32.mrb[0].mxu0
  %1779 = vmatprep.mubr.f32.mxu0 0.0
  %1780 = vmatmul.mubr.f32.gmra.mrb[0].mxu0 %v252
  %v1781 = vpop.f32.mrb[0].mxu0
  %v1782 = vadd.f32 0.0, %v1781
  %v1783 = vpop.f32.mrb[0].mxu0
  %1784 = vmatprep.mubr.f32.mxu0 0.0
  %1785 = vmatmul.mubr.f32.gmra.mrb[0].mxu0 %v255
  %v1786 = vpop.f32.mrb[0].mxu0
  %v1787 = vadd.f32 0.0, %v1786
  %v1788 = vpop.f32.mrb[0].mxu0
  %1789 = vmatprep.mubr.f32.mxu0 0.0
  %1790 = vmatmul.mubr.f32.gmra.mrb[0].mxu0 %v258
  %v1791 = vpop.f32.mrb[0].mxu0
  %v1792 = vadd.f32 0.0, %v1791
  %v1793 = vpop.f32.mrb[0].mxu0
  %1794 = vdwg.mxu0
  %v1795 = vadd.f32 %v1652, %v1757
  %v1796 = vadd.f32 %v1657, %v1762
  %v1797 = vadd.f32 %v1662, %v1767
  %v1798 = vadd.f32 %v1667, %v1772
  %v1799 = vadd.f32 %v1672, %v1777
  %v1800 = vadd.f32 %v1677, %v1782
  %v1801 = vadd.f32 %v1682, %v1787
  %v1802 = vadd.f32 %v1687, %v1792
  %v1803 = vxor.u32 %v1795, 2147483648
  %v1804 = vxor.u32 %v1796, 2147483648
  %v1805 = vmul.f32 %v1803, 1.442695
  %v1806 = vpow.pop %v1805
  %v1807 = vmul.f32 %v1804, 1.442695
  %v1808 = vpow.pop %v1807
  %v1809 = vadd.f32 %v1806, 1.0
  %v1810 = vadd.f32 %v1808, 1.0
  %v1811 = vrcp.pop %v1809
  %v1812 = vmul.f32 1.0, %v1811
  %v1813 = vrcp.pop %v1810
  %v1814 = vmul.f32 1.0, %v1813
  %v1815 = vxor.u32 %v1797, 2147483648
  %v1816 = vxor.u32 %v1798, 2147483648
  %v1817 = vmul.f32 %v1815, 1.442695
  %v1818 = vpow.pop %v1817
  %v1819 = vmul.f32 %v1816, 1.442695
  %v1820 = vpow.pop %v1819
  %v1821 = vadd.f32 %v1818, 1.0
  %v1822 = vadd.f32 %v1820, 1.0
  %v1823 = vrcp.pop %v1821
  %v1824 = vmul.f32 1.0, %v1823
  %v1825 = vrcp.pop %v1822
  %v1826 = vmul.f32 1.0, %v1825
  %v1827 = vtanh.pop %v1799
  %v1828 = vtanh.pop %v1800
  %v1829 = vxor.u32 %v1801, 2147483648
  %v1830 = vxor.u32 %v1802, 2147483648
  %v1831 = vmul.f32 %v1829, 1.442695
  %v1832 = vpow.pop %v1831
  %v1833 = vmul.f32 %v1830, 1.442695
  %v1834 = vpow.pop %v1833
  %v1835 = vadd.f32 %v1832, 1.0
  %v1836 = vadd.f32 %v1834, 1.0
  %v1837 = vrcp.pop %v1835
  %v1838 = vmul.f32 1.0, %v1837
  %v1839 = vrcp.pop %v1836
  %v1840 = vmul.f32 1.0, %v1839
  %v1841 = vmul.f32 %v1824, %v1559
  %v1842 = vmul.f32 %v1826, %v1560
  %v1843 = vmul.f32 %v1812, %v1827
  %v1844 = vmul.f32 %v1814, %v1828
  %v1845 = vadd.f32 %v1841, %v1843
  %v1846 = vadd.f32 %v1842, %v1844
  %v1847 = vtanh.pop %v1845
  %v1848 = vtanh.pop %v1846
  %v1849 = vmul.f32 %v1838, %v1847
  %v1850 = vmul.f32 %v1840, %v1848
  %s1851 = scalar_lea.vmem %s0, 12
  %v1852 = vld [vmem:[%s1851] sm:$0x3]
  %v1853 = vlaneseq
  %v1854 = vshrl.u32 %v1853, 7
  %v1855 = vsub.s32 0, %v1854
  %v1856 = vrot.slane %v1852, %v1855
  %v1857 = vmul.f32 %v33, %v1856
  %v1858 = vmul.f32 %v38, %v1856
  %v1859 = vlaneseq
  %v1860 = vshrl.u32 %v1859, 7
  %v1861 = vsub.s32 1, %v1860
  %v1862 = vrot.slane %v1852, %v1861
  %v1863 = vmul.f32 %v48, %v1862
  %v1864 = vmul.f32 %v52, %v1862
  %v1865 = vadd.f32 %v1857, %v1863
  %v1866 = vadd.f32 %v1858, %v1864
  %v1867 = vadd.f32 %v1865, %v64
  %v1868 = vadd.f32 %v1866, %v68
  %v1869 = vmax.f32 %v1867, 0.0
  %v1870 = vmax.f32 %v1868, 0.0
  %1871 = vmatprep.subr.mxu0 0.0
  %1872 = vmatpush1.msra.mxu0 %v1869
  %1873 = vmatprep.subr.mxu0 0.0
  %1874 = vmatpush1.msra.mxu0 %v1870
  %1875 = vmatprep.subr.mxu0 0.0
  %1876 = vmatpush1.msra.mxu0 0.0
  %1877 = vmatprep.subr.mxu0 0.0
  %1878 = vmatpush1.msra.mxu0 0.0
  %1879 = vmatprep.subr.mxu0 0.0
  %1880 = vmatpush1.msra.mxu0 0.0
  %1881 = vmatprep.subr.mxu0 0.0
  %1882 = vmatpush1.msra.mxu0 0.0
  %1883 = vmatprep.subr.mxu0 0.0
  %1884 = vmatpush1.msra.mxu0 0.0
  %1885 = vmatprep.subr.mxu0 0.0
  %1886 = vmatpush1.msra.mxu0 0.0
  %1887 = vmatprep.subr.mxu0 0.0
  %1888 = vmatpush1.msra.mxu0 0.0
  %1889 = vmatprep.subr.mxu0 0.0
  %1890 = vmatpush1.msra.mxu0 0.0
  %1891 = vmatprep.subr.mxu0 0.0
  %1892 = vmatpush1.msra.mxu0 0.0
  %1893 = vmatprep.subr.mxu0 0.0
  %1894 = vmatpush1.msra.mxu0 0.0
  %1895 = vmatprep.subr.mxu0 0.0
  %1896 = vmatpush1.msra.mxu0 0.0
  %1897 = vmatprep.subr.mxu0 0.0
  %1898 = vmatpush1.msra.mxu0 0.0
  %1899 = vmatprep.subr.mxu0 0.0
  %1900 = vmatpush1.msra.mxu0 0.0
  %1901 = vmatprep.subr.mxu0 0.0
  %1902 = vmatpush1.msra.mxu0 0.0
  %1903 = vmatprep.subr.mxu0 0.0
  %1904 = vmatpush1.msra.mxu0 0.0
  %1905 = vmatprep.subr.mxu0 0.0
  %1906 = vmatpush1.msra.mxu0 0.0
  %1907 = vmatprep.subr.mxu0 0.0
  %1908 = vmatpush1.msra.mxu0 0.0
  %1909 = vmatprep.subr.mxu0 0.0
  %1910 = vmatpush1.msra.mxu0 0.0
  %1911 = vmatprep.subr.mxu0 0.0
  %1912 = vmatpush1.msra.mxu0 0.0
  %1913 = vmatprep.subr.mxu0 0.0
  %1914 = vmatpush1.msra.mxu0 0.0
  %1915 = vmatprep.subr.mxu0 0.0
  %1916 = vmatpush1.msra.mxu0 0.0
  %1917 = vmatprep.subr.mxu0 0.0
  %1918 = vmatpush1.msra.mxu0 0.0
  %1919 = vmatprep.subr.mxu0 0.0
  %1920 = vmatpush1.msra.mxu0 0.0
  %1921 = vmatprep.subr.mxu0 0.0
  %1922 = vmatpush1.msra.mxu0 0.0
  %1923 = vmatprep.subr.mxu0 0.0
  %1924 = vmatpush1.msra.mxu0 0.0
  %1925 = vmatprep.subr.mxu0 0.0
  %1926 = vmatpush1.msra.mxu0 0.0
  %1927 = vmatprep.subr.mxu0 0.0
  %1928 = vmatpush1.msra.mxu0 0.0
  %1929 = vmatprep.subr.mxu0 0.0
  %1930 = vmatpush1.msra.mxu0 0.0
  %1931 = vmatprep.subr.mxu0 0.0
  %1932 = vmatpush1.msra.mxu0 0.0
  %1933 = vmatprep.subr.mxu0 0.0
  %1934 = vmatpush1.msra.mxu0 0.0
  %1935 = vmatprep.mubr.f32.mxu0 0.0
  %1936 = vmatmul.mubr.f32.gmra.mrb[0].mxu0 %v115
  %v1937 = vpop.f32.mrb[0].mxu0
  %v1938 = vadd.f32 %v77, %v1937
  %v1939 = vpop.f32.mrb[0].mxu0
  %1940 = vmatprep.mubr.f32.mxu0 0.0
  %1941 = vmatmul.mubr.f32.gmra.mrb[0].mxu0 %v117
  %v1942 = vpop.f32.mrb[0].mxu0
  %v1943 = vadd.f32 %v82, %v1942
  %v1944 = vpop.f32.mrb[0].mxu0
  %1945 = vmatprep.mubr.f32.mxu0 0.0
  %1946 = vmatmul.mubr.f32.gmra.mrb[0].mxu0 %v119
  %v1947 = vpop.f32.mrb[0].mxu0
  %v1948 = vadd.f32 %v87, %v1947
  %v1949 = vpop.f32.mrb[0].mxu0
  %1950 = vmatprep.mubr.f32.mxu0 0.0
  %1951 = vmatmul.mubr.f32.gmra.mrb[0].mxu0 %v121
  %v1952 = vpop.f32.mrb[0].mxu0
  %v1953 = vadd.f32 %v92, %v1952
  %v1954 = vpop.f32.mrb[0].mxu0
  %1955 = vmatprep.mubr.f32.mxu0 0.0
  %1956 = vmatmul.mubr.f32.gmra.mrb[0].mxu0 %v123
  %v1957 = vpop.f32.mrb[0].mxu0
  %v1958 = vadd.f32 %v97, %v1957
  %v1959 = vpop.f32.mrb[0].mxu0
  %1960 = vmatprep.mubr.f32.mxu0 0.0
  %1961 = vmatmul.mubr.f32.gmra.mrb[0].mxu0 %v125
  %v1962 = vpop.f32.mrb[0].mxu0
  %v1963 = vadd.f32 %v102, %v1962
  %v1964 = vpop.f32.mrb[0].mxu0
  %1965 = vmatprep.mubr.f32.mxu0 0.0
  %1966 = vmatmul.mubr.f32.gmra.mrb[0].mxu0 %v127
  %v1967 = vpop.f32.mrb[0].mxu0
  %v1968 = vadd.f32 %v107, %v1967
  %v1969 = vpop.f32.mrb[0].mxu0
  %1970 = vmatprep.mubr.f32.mxu0 0.0
  %1971 = vmatmul.mubr.f32.gmra.mrb[0].mxu0 %v129
  %v1972 = vpop.f32.mrb[0].mxu0
  %v1973 = vadd.f32 %v112, %v1972
  %v1974 = vpop.f32.mrb[0].mxu0
  %1975 = vdwg.mxu0
  %1976 = vmatprep.subr.mxu0 0.0
  %1977 = vmatpush1.msra.mxu0 %v1849
  %1978 = vmatprep.subr.mxu0 0.0
  %1979 = vmatpush1.msra.mxu0 %v1850
  %1980 = vmatprep.subr.mxu0 0.0
  %1981 = vmatpush1.msra.mxu0 0.0
  %1982 = vmatprep.subr.mxu0 0.0
  %1983 = vmatpush1.msra.mxu0 0.0
  %1984 = vmatprep.subr.mxu0 0.0
  %1985 = vmatpush1.msra.mxu0 0.0
  %1986 = vmatprep.subr.mxu0 0.0
  %1987 = vmatpush1.msra.mxu0 0.0
  %1988 = vmatprep.subr.mxu0 0.0
  %1989 = vmatpush1.msra.mxu0 0.0
  %1990 = vmatprep.subr.mxu0 0.0
  %1991 = vmatpush1.msra.mxu0 0.0
  %1992 = vmatprep.subr.mxu0 0.0
  %1993 = vmatpush1.msra.mxu0 0.0
  %1994 = vmatprep.subr.mxu0 0.0
  %1995 = vmatpush1.msra.mxu0 0.0
  %1996 = vmatprep.subr.mxu0 0.0
  %1997 = vmatpush1.msra.mxu0 0.0
  %1998 = vmatprep.subr.mxu0 0.0
  %1999 = vmatpush1.msra.mxu0 0.0
  %2000 = vmatprep.subr.mxu0 0.0
  %2001 = vmatpush1.msra.mxu0 0.0
  %2002 = vmatprep.subr.mxu0 0.0
  %2003 = vmatpush1.msra.mxu0 0.0
  %2004 = vmatprep.subr.mxu0 0.0
  %2005 = vmatpush1.msra.mxu0 0.0
  %2006 = vmatprep.subr.mxu0 0.0
  %2007 = vmatpush1.msra.mxu0 0.0
  %2008 = vmatprep.subr.mxu0 0.0
  %2009 = vmatpush1.msra.mxu0 0.0
  %2010 = vmatprep.subr.mxu0 0.0
  %2011 = vmatpush1.msra.mxu0 0.0
  %2012 = vmatprep.subr.mxu0 0.0
  %2013 = vmatpush1.msra.mxu0 0.0
  %2014 = vmatprep.subr.mxu0 0.0
  %2015 = vmatpush1.msra.mxu0 0.0
  %2016 = vmatprep.subr.mxu0 0.0
  %2017 = vmatpush1.msra.mxu0 0.0
  %2018 = vmatprep.subr.mxu0 0.0
  %2019 = vmatpush1.msra.mxu0 0.0
  %2020 = vmatprep.subr.mxu0 0.0
  %2021 = vmatpush1.msra.mxu0 0.0
  %2022 = vmatprep.subr.mxu0 0.0
  %2023 = vmatpush1.msra.mxu0 0.0
  %2024 = vmatprep.subr.mxu0 0.0
  %2025 = vmatpush1.msra.mxu0 0.0
  %2026 = vmatprep.subr.mxu0 0.0
  %2027 = vmatpush1.msra.mxu0 0.0
  %2028 = vmatprep.subr.mxu0 0.0
  %2029 = vmatpush1.msra.mxu0 0.0
  %2030 = vmatprep.subr.mxu0 0.0
  %2031 = vmatpush1.msra.mxu0 0.0
  %2032 = vmatprep.subr.mxu0 0.0
  %2033 = vmatpush1.msra.mxu0 0.0
  %2034 = vmatprep.subr.mxu0 0.0
  %2035 = vmatpush1.msra.mxu0 0.0
  %2036 = vmatprep.subr.mxu0 0.0
  %2037 = vmatpush1.msra.mxu0 0.0
  %2038 = vmatprep.subr.mxu0 0.0
  %2039 = vmatpush1.msra.mxu0 0.0
  %2040 = vmatprep.mubr.f32.mxu0 0.0
  %2041 = vmatmul.mubr.f32.gmra.mrb[0].mxu0 %v237
  %v2042 = vpop.f32.mrb[0].mxu0
  %v2043 = vadd.f32 0.0, %v2042
  %v2044 = vpop.f32.mrb[0].mxu0
  %2045 = vmatprep.mubr.f32.mxu0 0.0
  %2046 = vmatmul.mubr.f32.gmra.mrb[0].mxu0 %v240
  %v2047 = vpop.f32.mrb[0].mxu0
  %v2048 = vadd.f32 0.0, %v2047
  %v2049 = vpop.f32.mrb[0].mxu0
  %2050 = vmatprep.mubr.f32.mxu0 0.0
  %2051 = vmatmul.mubr.f32.gmra.mrb[0].mxu0 %v243
  %v2052 = vpop.f32.mrb[0].mxu0
  %v2053 = vadd.f32 0.0, %v2052
  %v2054 = vpop.f32.mrb[0].mxu0
  %2055 = vmatprep.mubr.f32.mxu0 0.0
  %2056 = vmatmul.mubr.f32.gmra.mrb[0].mxu0 %v246
  %v2057 = vpop.f32.mrb[0].mxu0
  %v2058 = vadd.f32 0.0, %v2057
  %v2059 = vpop.f32.mrb[0].mxu0
  %2060 = vmatprep.mubr.f32.mxu0 0.0
  %2061 = vmatmul.mubr.f32.gmra.mrb[0].mxu0 %v249
  %v2062 = vpop.f32.mrb[0].mxu0
  %v2063 = vadd.f32 0.0, %v2062
  %v2064 = vpop.f32.mrb[0].mxu0
  %2065 = vmatprep.mubr.f32.mxu0 0.0
  %2066 = vmatmul.mubr.f32.gmra.mrb[0].mxu0 %v252
  %v2067 = vpop.f32.mrb[0].mxu0
  %v2068 = vadd.f32 0.0, %v2067
  %v2069 = vpop.f32.mrb[0].mxu0
  %2070 = vmatprep.mubr.f32.mxu0 0.0
  %2071 = vmatmul.mubr.f32.gmra.mrb[0].mxu0 %v255
  %v2072 = vpop.f32.mrb[0].mxu0
  %v2073 = vadd.f32 0.0, %v2072
  %v2074 = vpop.f32.mrb[0].mxu0
  %2075 = vmatprep.mubr.f32.mxu0 0.0
  %2076 = vmatmul.mubr.f32.gmra.mrb[0].mxu0 %v258
  %v2077 = vpop.f32.mrb[0].mxu0
  %v2078 = vadd.f32 0.0, %v2077
  %v2079 = vpop.f32.mrb[0].mxu0
  %2080 = vdwg.mxu0
  %v2081 = vadd.f32 %v1938, %v2043
  %v2082 = vadd.f32 %v1943, %v2048
  %v2083 = vadd.f32 %v1948, %v2053
  %v2084 = vadd.f32 %v1953, %v2058
  %v2085 = vadd.f32 %v1958, %v2063
  %v2086 = vadd.f32 %v1963, %v2068
  %v2087 = vadd.f32 %v1968, %v2073
  %v2088 = vadd.f32 %v1973, %v2078
  %v2089 = vxor.u32 %v2081, 2147483648
  %v2090 = vxor.u32 %v2082, 2147483648
  %v2091 = vmul.f32 %v2089, 1.442695
  %v2092 = vpow.pop %v2091
  %v2093 = vmul.f32 %v2090, 1.442695
  %v2094 = vpow.pop %v2093
  %v2095 = vadd.f32 %v2092, 1.0
  %v2096 = vadd.f32 %v2094, 1.0
  %v2097 = vrcp.pop %v2095
  %v2098 = vmul.f32 1.0, %v2097
  %v2099 = vrcp.pop %v2096
  %v2100 = vmul.f32 1.0, %v2099
  %v2101 = vxor.u32 %v2083, 2147483648
  %v2102 = vxor.u32 %v2084, 2147483648
  %v2103 = vmul.f32 %v2101, 1.442695
  %v2104 = vpow.pop %v2103
  %v2105 = vmul.f32 %v2102, 1.442695
  %v2106 = vpow.pop %v2105
  %v2107 = vadd.f32 %v2104, 1.0
  %v2108 = vadd.f32 %v2106, 1.0
  %v2109 = vrcp.pop %v2107
  %v2110 = vmul.f32 1.0, %v2109
  %v2111 = vrcp.pop %v2108
  %v2112 = vmul.f32 1.0, %v2111
  %v2113 = vtanh.pop %v2085
  %v2114 = vtanh.pop %v2086
  %v2115 = vxor.u32 %v2087, 2147483648
  %v2116 = vxor.u32 %v2088, 2147483648
  %v2117 = vmul.f32 %v2115, 1.442695
  %v2118 = vpow.pop %v2117
  %v2119 = vmul.f32 %v2116, 1.442695
  %v2120 = vpow.pop %v2119
  %v2121 = vadd.f32 %v2118, 1.0
  %v2122 = vadd.f32 %v2120, 1.0
  %v2123 = vrcp.pop %v2121
  %v2124 = vmul.f32 1.0, %v2123
  %v2125 = vrcp.pop %v2122
  %v2126 = vmul.f32 1.0, %v2125
  %v2127 = vmul.f32 %v2110, %v1845
  %v2128 = vmul.f32 %v2112, %v1846
  %v2129 = vmul.f32 %v2098, %v2113
  %v2130 = vmul.f32 %v2100, %v2114
  %v2131 = vadd.f32 %v2127, %v2129
  %v2132 = vadd.f32 %v2128, %v2130
  %v2133 = vtanh.pop %v2131
  %v2134 = vtanh.pop %v2132
  %v2135 = vmul.f32 %v2124, %v2133
  %v2136 = vmul.f32 %v2126, %v2134
  %s2137 = scalar_lea.vmem %s0, 14
  %v2138 = vld [vmem:[%s2137] sm:$0x3]
  %v2139 = vlaneseq
  %v2140 = vshrl.u32 %v2139, 7
  %v2141 = vsub.s32 0, %v2140
  %v2142 = vrot.slane %v2138, %v2141
  %v2143 = vmul.f32 %v33, %v2142
  %v2144 = vmul.f32 %v38, %v2142
  %v2145 = vlaneseq
  %v2146 = vshrl.u32 %v2145, 7
  %v2147 = vsub.s32 1, %v2146
  %v2148 = vrot.slane %v2138, %v2147
  %v2149 = vmul.f32 %v48, %v2148
  %v2150 = vmul.f32 %v52, %v2148
  %v2151 = vadd.f32 %v2143, %v2149
  %v2152 = vadd.f32 %v2144, %v2150
  %v2153 = vadd.f32 %v2151, %v64
  %v2154 = vadd.f32 %v2152, %v68
  %v2155 = vmax.f32 %v2153, 0.0
  %v2156 = vmax.f32 %v2154, 0.0
  %2157 = vmatprep.subr.mxu0 0.0
  %2158 = vmatpush1.msra.mxu0 %v2155
  %2159 = vmatprep.subr.mxu0 0.0
  %2160 = vmatpush1.msra.mxu0 %v2156
  %2161 = vmatprep.subr.mxu0 0.0
  %2162 = vmatpush1.msra.mxu0 0.0
  %2163 = vmatprep.subr.mxu0 0.0
  %2164 = vmatpush1.msra.mxu0 0.0
  %2165 = vmatprep.subr.mxu0 0.0
  %2166 = vmatpush1.msra.mxu0 0.0
  %2167 = vmatprep.subr.mxu0 0.0
  %2168 = vmatpush1.msra.mxu0 0.0
  %2169 = vmatprep.subr.mxu0 0.0
  %2170 = vmatpush1.msra.mxu0 0.0
  %2171 = vmatprep.subr.mxu0 0.0
  %2172 = vmatpush1.msra.mxu0 0.0
  %2173 = vmatprep.subr.mxu0 0.0
  %2174 = vmatpush1.msra.mxu0 0.0
  %2175 = vmatprep.subr.mxu0 0.0
  %2176 = vmatpush1.msra.mxu0 0.0
  %2177 = vmatprep.subr.mxu0 0.0
  %2178 = vmatpush1.msra.mxu0 0.0
  %2179 = vmatprep.subr.mxu0 0.0
  %2180 = vmatpush1.msra.mxu0 0.0
  %2181 = vmatprep.subr.mxu0 0.0
  %2182 = vmatpush1.msra.mxu0 0.0
  %2183 = vmatprep.subr.mxu0 0.0
  %2184 = vmatpush1.msra.mxu0 0.0
  %2185 = vmatprep.subr.mxu0 0.0
  %2186 = vmatpush1.msra.mxu0 0.0
  %2187 = vmatprep.subr.mxu0 0.0
  %2188 = vmatpush1.msra.mxu0 0.0
  %2189 = vmatprep.subr.mxu0 0.0
  %2190 = vmatpush1.msra.mxu0 0.0
  %2191 = vmatprep.subr.mxu0 0.0
  %2192 = vmatpush1.msra.mxu0 0.0
  %2193 = vmatprep.subr.mxu0 0.0
  %2194 = vmatpush1.msra.mxu0 0.0
  %2195 = vmatprep.subr.mxu0 0.0
  %2196 = vmatpush1.msra.mxu0 0.0
  %2197 = vmatprep.subr.mxu0 0.0
  %2198 = vmatpush1.msra.mxu0 0.0
  %2199 = vmatprep.subr.mxu0 0.0
  %2200 = vmatpush1.msra.mxu0 0.0
  %2201 = vmatprep.subr.mxu0 0.0
  %2202 = vmatpush1.msra.mxu0 0.0
  %2203 = vmatprep.subr.mxu0 0.0
  %2204 = vmatpush1.msra.mxu0 0.0
  %2205 = vmatprep.subr.mxu0 0.0
  %2206 = vmatpush1.msra.mxu0 0.0
  %2207 = vmatprep.subr.mxu0 0.0
  %2208 = vmatpush1.msra.mxu0 0.0
  %2209 = vmatprep.subr.mxu0 0.0
  %2210 = vmatpush1.msra.mxu0 0.0
  %2211 = vmatprep.subr.mxu0 0.0
  %2212 = vmatpush1.msra.mxu0 0.0
  %2213 = vmatprep.subr.mxu0 0.0
  %2214 = vmatpush1.msra.mxu0 0.0
  %2215 = vmatprep.subr.mxu0 0.0
  %2216 = vmatpush1.msra.mxu0 0.0
  %2217 = vmatprep.subr.mxu0 0.0
  %2218 = vmatpush1.msra.mxu0 0.0
  %2219 = vmatprep.subr.mxu0 0.0
  %2220 = vmatpush1.msra.mxu0 0.0
  %2221 = vmatprep.mubr.f32.mxu0 0.0
  %2222 = vmatmul.mubr.f32.gmra.mrb[0].mxu0 %v115
  %v2223 = vpop.f32.mrb[0].mxu0
  %v2224 = vadd.f32 %v77, %v2223
  %v2225 = vpop.f32.mrb[0].mxu0
  %2226 = vmatprep.mubr.f32.mxu0 0.0
  %2227 = vmatmul.mubr.f32.gmra.mrb[0].mxu0 %v117
  %v2228 = vpop.f32.mrb[0].mxu0
  %v2229 = vadd.f32 %v82, %v2228
  %v2230 = vpop.f32.mrb[0].mxu0
  %2231 = vmatprep.mubr.f32.mxu0 0.0
  %2232 = vmatmul.mubr.f32.gmra.mrb[0].mxu0 %v119
  %v2233 = vpop.f32.mrb[0].mxu0
  %v2234 = vadd.f32 %v87, %v2233
  %v2235 = vpop.f32.mrb[0].mxu0
  %2236 = vmatprep.mubr.f32.mxu0 0.0
  %2237 = vmatmul.mubr.f32.gmra.mrb[0].mxu0 %v121
  %v2238 = vpop.f32.mrb[0].mxu0
  %v2239 = vadd.f32 %v92, %v2238
  %v2240 = vpop.f32.mrb[0].mxu0
  %2241 = vmatprep.mubr.f32.mxu0 0.0
  %2242 = vmatmul.mubr.f32.gmra.mrb[0].mxu0 %v123
  %v2243 = vpop.f32.mrb[0].mxu0
  %v2244 = vadd.f32 %v97, %v2243
  %v2245 = vpop.f32.mrb[0].mxu0
  %2246 = vmatprep.mubr.f32.mxu0 0.0
  %2247 = vmatmul.mubr.f32.gmra.mrb[0].mxu0 %v125
  %v2248 = vpop.f32.mrb[0].mxu0
  %v2249 = vadd.f32 %v102, %v2248
  %v2250 = vpop.f32.mrb[0].mxu0
  %2251 = vmatprep.mubr.f32.mxu0 0.0
  %2252 = vmatmul.mubr.f32.gmra.mrb[0].mxu0 %v127
  %v2253 = vpop.f32.mrb[0].mxu0
  %v2254 = vadd.f32 %v107, %v2253
  %v2255 = vpop.f32.mrb[0].mxu0
  %2256 = vmatprep.mubr.f32.mxu0 0.0
  %2257 = vmatmul.mubr.f32.gmra.mrb[0].mxu0 %v129
  %v2258 = vpop.f32.mrb[0].mxu0
  %v2259 = vadd.f32 %v112, %v2258
  %v2260 = vpop.f32.mrb[0].mxu0
  %2261 = vdwg.mxu0
  %2262 = vmatprep.subr.mxu0 0.0
  %2263 = vmatpush1.msra.mxu0 %v2135
  %2264 = vmatprep.subr.mxu0 0.0
  %2265 = vmatpush1.msra.mxu0 %v2136
  %2266 = vmatprep.subr.mxu0 0.0
  %2267 = vmatpush1.msra.mxu0 0.0
  %2268 = vmatprep.subr.mxu0 0.0
  %2269 = vmatpush1.msra.mxu0 0.0
  %2270 = vmatprep.subr.mxu0 0.0
  %2271 = vmatpush1.msra.mxu0 0.0
  %2272 = vmatprep.subr.mxu0 0.0
  %2273 = vmatpush1.msra.mxu0 0.0
  %2274 = vmatprep.subr.mxu0 0.0
  %2275 = vmatpush1.msra.mxu0 0.0
  %2276 = vmatprep.subr.mxu0 0.0
  %2277 = vmatpush1.msra.mxu0 0.0
  %2278 = vmatprep.subr.mxu0 0.0
  %2279 = vmatpush1.msra.mxu0 0.0
  %2280 = vmatprep.subr.mxu0 0.0
  %2281 = vmatpush1.msra.mxu0 0.0
  %2282 = vmatprep.subr.mxu0 0.0
  %2283 = vmatpush1.msra.mxu0 0.0
  %2284 = vmatprep.subr.mxu0 0.0
  %2285 = vmatpush1.msra.mxu0 0.0
  %2286 = vmatprep.subr.mxu0 0.0
  %2287 = vmatpush1.msra.mxu0 0.0
  %2288 = vmatprep.subr.mxu0 0.0
  %2289 = vmatpush1.msra.mxu0 0.0
  %2290 = vmatprep.subr.mxu0 0.0
  %2291 = vmatpush1.msra.mxu0 0.0
  %2292 = vmatprep.subr.mxu0 0.0
  %2293 = vmatpush1.msra.mxu0 0.0
  %2294 = vmatprep.subr.mxu0 0.0
  %2295 = vmatpush1.msra.mxu0 0.0
  %2296 = vmatprep.subr.mxu0 0.0
  %2297 = vmatpush1.msra.mxu0 0.0
  %2298 = vmatprep.subr.mxu0 0.0
  %2299 = vmatpush1.msra.mxu0 0.0
  %2300 = vmatprep.subr.mxu0 0.0
  %2301 = vmatpush1.msra.mxu0 0.0
  %2302 = vmatprep.subr.mxu0 0.0
  %2303 = vmatpush1.msra.mxu0 0.0
  %2304 = vmatprep.subr.mxu0 0.0
  %2305 = vmatpush1.msra.mxu0 0.0
  %2306 = vmatprep.subr.mxu0 0.0
  %2307 = vmatpush1.msra.mxu0 0.0
  %2308 = vmatprep.subr.mxu0 0.0
  %2309 = vmatpush1.msra.mxu0 0.0
  %2310 = vmatprep.subr.mxu0 0.0
  %2311 = vmatpush1.msra.mxu0 0.0
  %2312 = vmatprep.subr.mxu0 0.0
  %2313 = vmatpush1.msra.mxu0 0.0
  %2314 = vmatprep.subr.mxu0 0.0
  %2315 = vmatpush1.msra.mxu0 0.0
  %2316 = vmatprep.subr.mxu0 0.0
  %2317 = vmatpush1.msra.mxu0 0.0
  %2318 = vmatprep.subr.mxu0 0.0
  %2319 = vmatpush1.msra.mxu0 0.0
  %2320 = vmatprep.subr.mxu0 0.0
  %2321 = vmatpush1.msra.mxu0 0.0
  %2322 = vmatprep.subr.mxu0 0.0
  %2323 = vmatpush1.msra.mxu0 0.0
  %2324 = vmatprep.subr.mxu0 0.0
  %2325 = vmatpush1.msra.mxu0 0.0
  %2326 = vmatprep.mubr.f32.mxu0 0.0
  %2327 = vmatmul.mubr.f32.gmra.mrb[0].mxu0 %v237
  %v2328 = vpop.f32.mrb[0].mxu0
  %v2329 = vadd.f32 0.0, %v2328
  %v2330 = vpop.f32.mrb[0].mxu0
  %2331 = vmatprep.mubr.f32.mxu0 0.0
  %2332 = vmatmul.mubr.f32.gmra.mrb[0].mxu0 %v240
  %v2333 = vpop.f32.mrb[0].mxu0
  %v2334 = vadd.f32 0.0, %v2333
  %v2335 = vpop.f32.mrb[0].mxu0
  %2336 = vmatprep.mubr.f32.mxu0 0.0
  %2337 = vmatmul.mubr.f32.gmra.mrb[0].mxu0 %v243
  %v2338 = vpop.f32.mrb[0].mxu0
  %v2339 = vadd.f32 0.0, %v2338
  %v2340 = vpop.f32.mrb[0].mxu0
  %2341 = vmatprep.mubr.f32.mxu0 0.0
  %2342 = vmatmul.mubr.f32.gmra.mrb[0].mxu0 %v246
  %v2343 = vpop.f32.mrb[0].mxu0
  %v2344 = vadd.f32 0.0, %v2343
  %v2345 = vpop.f32.mrb[0].mxu0
  %2346 = vmatprep.mubr.f32.mxu0 0.0
  %2347 = vmatmul.mubr.f32.gmra.mrb[0].mxu0 %v249
  %v2348 = vpop.f32.mrb[0].mxu0
  %v2349 = vadd.f32 0.0, %v2348
  %v2350 = vpop.f32.mrb[0].mxu0
  %2351 = vmatprep.mubr.f32.mxu0 0.0
  %2352 = vmatmul.mubr.f32.gmra.mrb[0].mxu0 %v252
  %v2353 = vpop.f32.mrb[0].mxu0
  %v2354 = vadd.f32 0.0, %v2353
  %v2355 = vpop.f32.mrb[0].mxu0
  %2356 = vmatprep.mubr.f32.mxu0 0.0
  %2357 = vmatmul.mubr.f32.gmra.mrb[0].mxu0 %v255
  %v2358 = vpop.f32.mrb[0].mxu0
  %v2359 = vadd.f32 0.0, %v2358
  %v2360 = vpop.f32.mrb[0].mxu0
  %2361 = vmatprep.mubr.f32.mxu0 0.0
  %2362 = vmatmul.mubr.f32.gmra.mrb[0].mxu0 %v258
  %v2363 = vpop.f32.mrb[0].mxu0
  %v2364 = vadd.f32 0.0, %v2363
  %v2365 = vpop.f32.mrb[0].mxu0
  %2366 = vdwg.mxu0
  %v2367 = vadd.f32 %v2224, %v2329
  %v2368 = vadd.f32 %v2229, %v2334
  %v2369 = vadd.f32 %v2234, %v2339
  %v2370 = vadd.f32 %v2239, %v2344
  %v2371 = vadd.f32 %v2244, %v2349
  %v2372 = vadd.f32 %v2249, %v2354
  %v2373 = vadd.f32 %v2254, %v2359
  %v2374 = vadd.f32 %v2259, %v2364
  %v2375 = vxor.u32 %v2367, 2147483648
  %v2376 = vxor.u32 %v2368, 2147483648
  %v2377 = vmul.f32 %v2375, 1.442695
  %v2378 = vpow.pop %v2377
  %v2379 = vmul.f32 %v2376, 1.442695
  %v2380 = vpow.pop %v2379
  %v2381 = vadd.f32 %v2378, 1.0
  %v2382 = vadd.f32 %v2380, 1.0
  %v2383 = vrcp.pop %v2381
  %v2384 = vmul.f32 1.0, %v2383
  %v2385 = vrcp.pop %v2382
  %v2386 = vmul.f32 1.0, %v2385
  %v2387 = vxor.u32 %v2369, 2147483648
  %v2388 = vxor.u32 %v2370, 2147483648
  %v2389 = vmul.f32 %v2387, 1.442695
  %v2390 = vpow.pop %v2389
  %v2391 = vmul.f32 %v2388, 1.442695
  %v2392 = vpow.pop %v2391
  %v2393 = vadd.f32 %v2390, 1.0
  %v2394 = vadd.f32 %v2392, 1.0
  %v2395 = vrcp.pop %v2393
  %v2396 = vmul.f32 1.0, %v2395
  %v2397 = vrcp.pop %v2394
  %v2398 = vmul.f32 1.0, %v2397
  %v2399 = vtanh.pop %v2371
  %v2400 = vtanh.pop %v2372
  %v2401 = vxor.u32 %v2373, 2147483648
  %v2402 = vxor.u32 %v2374, 2147483648
  %v2403 = vmul.f32 %v2401, 1.442695
  %v2404 = vpow.pop %v2403
  %v2405 = vmul.f32 %v2402, 1.442695
  %v2406 = vpow.pop %v2405
  %v2407 = vadd.f32 %v2404, 1.0
  %v2408 = vadd.f32 %v2406, 1.0
  %v2409 = vrcp.pop %v2407
  %v2410 = vmul.f32 1.0, %v2409
  %v2411 = vrcp.pop %v2408
  %v2412 = vmul.f32 1.0, %v2411
  %v2413 = vmul.f32 %v2396, %v2131
  %v2414 = vmul.f32 %v2398, %v2132
  %v2415 = vmul.f32 %v2384, %v2399
  %v2416 = vmul.f32 %v2386, %v2400
  %v2417 = vadd.f32 %v2413, %v2415
  %v2418 = vadd.f32 %v2414, %v2416
  %v2419 = vtanh.pop %v2417
  %v2420 = vtanh.pop %v2418
  %v2421 = vmul.f32 %v2410, %v2419
  %v2422 = vmul.f32 %v2412, %v2420
  %2423 = vst [vmem:[%s2] sm:$0xff] %v2421
  %2424 = vst [vmem:[%s2 + $0x8] sm:$0xff] %v2422
  // Predicated region
  $region10: #{social_encoder_forward.1} parent=0 // pred_check
    _
  $region11: #{social_encoder_forward.1} parent=0 // pred_check_branch
    %2426 = sbr.rel (0) target = $region13
  $region12: #{social_encoder_forward.1} parent=0 // pred_region
    _
  $region13: #{social_encoder_forward.1} parent=0 // pred_fallthru
    _
  // Predicated region
  $region14: #{social_encoder_forward.1} parent=0 // pred_check
    _
  $region15: #{social_encoder_forward.1} parent=0 // pred_check_branch
    %2428 = sbr.rel (0) target = $region17
  $region16: #{social_encoder_forward.1} parent=0 // pred_region
    _
  $region17: #{social_encoder_forward.1} parent=0 // pred_fallthru
    _

</llo_original>
